<compile_context>
chip_gen: v5e
topology: v5e:2x2
jax: 0.10.0
libtpu: 0.0.40
codegen_flags: <defaults>
</compile_context>

<pallas_src>
import functools

import jax
import jax.numpy as jnp
from jax import lax
from jax.experimental import pallas as pl
from jax.experimental.pallas import tpu as pltpu


# ----------------------------------------------------------------------------
# Fused kernel: time-chunked LSTM recurrence + chunk-level LeakyReLU/BN/Linear head
# ----------------------------------------------------------------------------
def lstm_fused_kernel(gx_ref, whh_ref, weff_ref, beff_ref, out_ref,
                      h_sc, c_sc, hseq_sc, *, fuse_gates):
    BB, H = h_sc.shape
    TC = out_ref.shape[0]

    # NOTE: cross-chunk carry correctness requires the time axis to be the INNERMOST
    # grid dimension and marked "arbitrary" (serial per core). Do not reorder the grid.
    @pl.when(pl.program_id(1) == 0)
    def _init():
        h_sc[...] = jnp.zeros_like(h_sc)
        c_sc[...] = jnp.zeros_like(c_sc)

    # Hoist the recurrent-weight loads out of the serial loop.
    if fuse_gates:
        whh = whh_ref[...]                       # (H, 4H); gate slices lane-aligned
        mm_dtype = whh.dtype
    else:
        whh = [whh_ref[g] for g in range(4)]     # 4 x (H, H), gate-stacked
        mm_dtype = whh[0].dtype

    def step(t, carry):
        h, c = carry
        hq = h.astype(mm_dtype)
        if fuse_gates:
            # One wide MXU op per step instead of four (same LHS, N = 4H).
            gates = gx_ref[t].astype(jnp.float32) + jnp.dot(
                hq, whh, preferred_element_type=jnp.float32)          # (BB, 4H)
            gi = gates[:, 0 * H:1 * H]
            gf = gates[:, 1 * H:2 * H]
            gg = gates[:, 2 * H:3 * H]
            go = gates[:, 3 * H:4 * H]
        else:
            gi = gx_ref[0, t].astype(jnp.float32) + jnp.dot(
                hq, whh[0], preferred_element_type=jnp.float32)
            gf = gx_ref[1, t].astype(jnp.float32) + jnp.dot(
                hq, whh[1], preferred_element_type=jnp.float32)
            gg = gx_ref[2, t].astype(jnp.float32) + jnp.dot(
                hq, whh[2], preferred_element_type=jnp.float32)
            go = gx_ref[3, t].astype(jnp.float32) + jnp.dot(
                hq, whh[3], preferred_element_type=jnp.float32)

        i_g = jax.nn.sigmoid(gi)
        f_g = jax.nn.sigmoid(gf)
        g_g = jnp.tanh(gg)
        o_g = jax.nn.sigmoid(go)

        c_new = f_g * c + i_g * g_g
        h_new = o_g * jnp.tanh(c_new)

        # Stash h for the chunk-level head; h/c themselves stay in registers.
        row = pl.multiple_of(t * BB, BB)
        hseq_sc[pl.ds(row, BB), :] = h_new
        return h_new, c_new

    # Unroll for LLO scheduler visibility (full for small chunks, partial otherwise).
    unroll = TC if TC <= 8 else (4 if TC % 4 == 0 else (2 if TC % 2 == 0 else 1))
    h_fin, c_fin = lax.fori_loop(0, TC, step, (h_sc[...], c_sc[...]), unroll=unroll)
    h_sc[...] = h_fin          # cross-chunk carry write (once per chunk)
    c_sc[...] = c_fin

    # Chunk-level fused head: LeakyReLU -> BatchNorm1d(eval, folded) -> Dropout(id) -> Linear
    a = hseq_sc[...]                                           # (TC*BB, H), f32
    a = jnp.where(a >= 0, a, jnp.float32(0.01) * a)
    w_eff = weff_ref[...]
    y = jnp.dot(a.astype(w_eff.dtype), w_eff,
                preferred_element_type=jnp.float32) + beff_ref[...]   # (TC*BB, O)
    out_ref[...] = y.reshape(out_ref.shape).astype(out_ref.dtype)


# ----------------------------------------------------------------------------
# Wrapper
# ----------------------------------------------------------------------------
def _pick_time_chunk(T, target):
    """Largest chunk <= target that divides T (every grid block is full)."""
    if T <= target:
        return T
    for tc in range(target, 0, -1):
        if T % tc == 0:
            return tc
    return T


def _vmem_estimate(TC, BB, H, O, wbytes):
    gx_block = 2 * TC * BB * 4 * H * wbytes        # double-buffered input block
    out_block = 2 * TC * BB * max(O, 1) * 4        # double-buffered output block
    weights = 2 * (4 * H * H + H * O + O) * wbytes
    scratch = (2 * BB * H + TC * BB * H) * 4       # h, c carries + hseq (f32)
    return gx_block + out_block + weights + scratch


def lstm_audio_pallas(x, params, *, time_chunk=128, batch_block=None,
                      weights_dtype=jnp.float32, vmem_budget=40 << 20):
    """x: (B, T, D) float32 -> (B, T, O) = LSTM -> LeakyReLU -> BN(eval) -> Dropout(id) -> Linear."""
    B, T, D = x.shape
    f32 = jnp.float32
    w_ih = params["w_ih"].astype(f32)              # (4H, D)
    w_hh = params["w_hh"].astype(f32)              # (4H, H)
    H = w_hh.shape[1]
    O = params["w_lin"].shape[0]

    # On v7x set batch_block = B // 2 (multiple of 8) so both TensorCores are used.
    BB = B if batch_block is None else batch_block
    assert B % BB == 0, "batch_block must divide the batch"
    assert BB % 8 == 0, "batch_block must be a multiple of 8 (sublane tile)"

    wbytes = jnp.dtype(weights_dtype).itemsize
    TC = _pick_time_chunk(T, time_chunk)
    # Auto-shrink the time chunk so the working set fits the VMEM budget (v7x: 64 MiB).
    while TC > 1 and _vmem_estimate(TC, BB, H, O, wbytes) > vmem_budget:
        TC = _pick_time_chunk(T, max(1, TC // 2))
    nb, nc = B // BB, T // TC
    fuse_gates = (H % 128 == 0)

    # ---- Input projection hoisted to XLA (lane-dense; deletes the old gx scratch) ----
    bias = (params["b_ih"] + params["b_hh"]).astype(f32)               # (4H,)
    gx = jnp.einsum("btd,gd->btg", x.astype(f32), w_ih) + bias          # (B, T, 4H)
    gx = jnp.transpose(gx, (1, 0, 2))                                    # (T, B, 4H) time-major

    if fuse_gates:
        gx_in = gx.astype(weights_dtype)                                 # (T, B, 4H)
        whh_in = w_hh.T.astype(weights_dtype)                            # (H, 4H)
        gx_spec = pl.BlockSpec((TC, BB, 4 * H), lambda b, c: (c, b, 0))
        whh_spec = pl.BlockSpec((H, 4 * H), lambda b, c: (0, 0))
    else:
        # Gate-stacked layout so no sub-128-lane gate slicing is needed in the kernel.
        gx_in = jnp.transpose(gx.reshape(T, B, 4, H), (2, 0, 1, 3)).astype(weights_dtype)
        whh_in = jnp.transpose(w_hh.reshape(4, H, H), (0, 2, 1)).astype(weights_dtype)
        gx_spec = pl.BlockSpec((4, TC, BB, H), lambda b, c: (0, c, b, 0))
        whh_spec = pl.BlockSpec((4, H, H), lambda b, c: (0, 0, 0))

    # ---- Fold BatchNorm1d (eval mode) into the final Linear ----
    s = params["bn_gamma"].astype(f32) * lax.rsqrt(params["bn_var"].astype(f32) + f32(1e-5))
    shift = params["bn_beta"].astype(f32) - params["bn_mean"].astype(f32) * s
    w_eff = (s[:, None] * params["w_lin"].astype(f32).T).astype(weights_dtype)   # (H, O)
    b_eff = (params["b_lin"].astype(f32)
             + shift @ params["w_lin"].astype(f32).T).reshape(1, O)               # (1, O) f32

    est = _vmem_estimate(TC, BB, H, O, wbytes)
    vmem_limit = int(min(64 << 20, max(32 << 20, est * 5 // 4)))

    kernel = functools.partial(lstm_fused_kernel, fuse_gates=fuse_gates)

    out_tbo = pl.pallas_call(
        kernel,
        out_shape=jax.ShapeDtypeStruct((T, B, O), x.dtype),
        grid_spec=pltpu.PrefetchScalarGridSpec(
            num_scalar_prefetch=0,
            grid=(nb, nc),        # (batch blocks ["parallel"], time chunks ["arbitrary"])
            in_specs=[
                gx_spec,
                # TODO(synk): mark the grid-invariant weights below with
                # pipeline_mode=pl.Buffered(1) when single-buffering is needed for
                # extra VMEM headroom (large H on v7x).
                whh_spec,
                pl.BlockSpec((H, O), lambda b, c: (0, 0)),
                pl.BlockSpec((1, O), lambda b, c: (0, 0)),
            ],
            out_specs=pl.BlockSpec((TC, BB, O), lambda b, c: (c, b, 0)),
            scratch_shapes=[
                pltpu.VMEM((BB, H), jnp.float32),        # h carry (cross-chunk)
                pltpu.VMEM((BB, H), jnp.float32),        # c carry (cross-chunk)
                pltpu.VMEM((TC * BB, H), jnp.float32),   # per-chunk hidden seq for the head
            ],
        ),
        compiler_params=pltpu.CompilerParams(
            dimension_semantics=("parallel", "arbitrary"),
            vmem_limit_bytes=vmem_limit,
        ),
    )(gx_in, whh_in, w_eff, b_eff)

    # (T, B, O) -> (B, T, O). Negligible at small O; for large O the head result could be
    # transposed in-kernel and stored into a (B, T, O) layout directly.
    return jnp.transpose(out_tbo, (1, 0, 2))


# ----------------------------------------------------------------------------
# Pure-JAX reference (for correctness check)
# ----------------------------------------------------------------------------
def reference_forward(x, params):
    w_ih, w_hh, b_ih, b_hh = params["w_ih"], params["w_hh"], params["b_ih"], params["b_hh"]
    B, T, D = x.shape
    H = w_hh.shape[1]

    def step(carry, x_t):
        h, c = carry
        gates = x_t @ w_ih.T + h @ w_hh.T + b_ih + b_hh
        i, f, g, o = jnp.split(gates, 4, axis=-1)
        i, f, g, o = jax.nn.sigmoid(i), jax.nn.sigmoid(f), jnp.tanh(g), jax.nn.sigmoid(o)
        c = f * c + i * g
        h = o * jnp.tanh(c)
        return (h, c), h

    init = (jnp.zeros((B, H), jnp.float32), jnp.zeros((B, H), jnp.float32))
    _, ys = jax.lax.scan(step, init, jnp.transpose(x, (1, 0, 2)))
    y = jnp.transpose(ys, (1, 0, 2))                        # (B, T, H)

    y = jnp.where(y >= 0, y, 0.01 * y)                      # LeakyReLU
    y = (y - params["bn_mean"]) * (params["bn_gamma"] *
         jax.lax.rsqrt(params["bn_var"] + 1e-5)) + params["bn_beta"]   # BN eval
    y = y @ params["w_lin"].T + params["b_lin"]             # Dropout(id) + Linear
    return y


# ----------------------------------------------------------------------------
# Parameter init (deterministic, PyTorch-style uniform ranges)
# ----------------------------------------------------------------------------
def init_params(key, input_dim, hidden_dim, output_dim):
    ks = jax.random.split(key, 6)
    k_lstm = 1.0 / jnp.sqrt(hidden_dim)
    k_lin = 1.0 / jnp.sqrt(hidden_dim)
    u = lambda k, shape, bound: jax.random.uniform(
        k, shape, jnp.float32, minval=-bound, maxval=bound)
    return {
        "w_ih": u(ks[0], (4 * hidden_dim, input_dim), k_lstm),
        "w_hh": u(ks[1], (4 * hidden_dim, hidden_dim), k_lstm),
        "b_ih": u(ks[2], (4 * hidden_dim,), k_lstm),
        "b_hh": u(ks[3], (4 * hidden_dim,), k_lstm),
        "bn_gamma": jnp.ones((hidden_dim,), jnp.float32),
        "bn_beta": jnp.zeros((hidden_dim,), jnp.float32),
        "bn_mean": jnp.zeros((hidden_dim,), jnp.float32),
        "bn_var": jnp.ones((hidden_dim,), jnp.float32),
        "w_lin": u(ks[4], (output_dim, hidden_dim), k_lin),
        "b_lin": u(ks[5], (output_dim,), k_lin),
    }


if __name__ == "__main__":
    key = jax.random.PRNGKey(0)

    configs = [
        # split-gate path (H % 128 != 0), cross-chunk carry (nc = 2), single batch block
        dict(B=8,  T=16, D=4, H=32,  O=1, tc=8, bb=None, wdt=jnp.float32,  atol=5e-4),
        # fused-gate path (H = 128), two batch blocks (nb = 2), cross-chunk carry
        dict(B=16, T=16, D=4, H=128, O=1, tc=8, bb=8,    wdt=jnp.float32,  atol=5e-4),
        # bf16 matmul operands (f32 accumulate / carries), loose tolerance
        dict(B=16, T=16, D=4, H=128, O=1, tc=8, bb=8,    wdt=jnp.bfloat16, atol=1e-1),
    ]

    for cfg in configs:
        k_x, k_p, key = jax.random.split(key, 3)
        x = jax.random.normal(k_x, (cfg["B"], cfg["T"], cfg["D"]), jnp.float32)
        params = init_params(k_p, cfg["D"], cfg["H"], cfg["O"])

        fwd = jax.jit(functools.partial(
            lstm_audio_pallas, time_chunk=cfg["tc"], batch_block=cfg["bb"],
            weights_dtype=cfg["wdt"]))
        out = jax.block_until_ready(fwd(x, params))

        ref = reference_forward(x, params)
        assert out.shape == (cfg["B"], cfg["T"], cfg["O"]), out.shape
        err = float(jnp.max(jnp.abs(out - ref)))
        assert err <= cfg["atol"], (cfg, err)

    print("KERNEL_OK")
</pallas_src>

<mosaic_0001>
module attributes {stable_mosaic.version = 11 : i64} {
  func.func @lstm_fused_kernel(%arg0: i32, %arg1: i32, %arg2: memref<4x8x8x32xf32, #tpu.memory_space<vmem>>, %arg3: memref<4x32x32xf32, #tpu.memory_space<vmem>>, %arg4: memref<32x1xf32, #tpu.memory_space<vmem>>, %arg5: memref<1x1xf32, #tpu.memory_space<vmem>>, %arg6: memref<8x8x1xf32, #tpu.memory_space<vmem>>, %arg7: memref<8x32xf32, #tpu.memory_space<vmem>>, %arg8: memref<8x32xf32, #tpu.memory_space<vmem>>, %arg9: memref<64x32xf32, #tpu.memory_space<vmem>>) attributes {dimension_semantics = [#tpu.dimension_semantics<parallel>, #tpu.dimension_semantics<arbitrary>], iteration_bounds = array<i64: 1, 2>, scalar_prefetch = 0 : i64, scratch_operands = 3 : i64, tpu.core_type = #tpu.core_type<tc>, window_params = [{transform_indices = @transform_0, window_bounds = array<i64: 4, 8, 8, 32>}, {pipeline_mode = #tpu.pipeline_mode<synchronous>, transform_indices = @transform_1, window_bounds = array<i64: 4, 32, 32>}, {pipeline_mode = #tpu.pipeline_mode<synchronous>, transform_indices = @transform_2, window_bounds = array<i64: 32, 1>}, {pipeline_mode = #tpu.pipeline_mode<synchronous>, transform_indices = @transform_3, window_bounds = array<i64: 1, 1>}, {transform_indices = @transform_4, window_bounds = array<i64: 8, 8, 1>}]} {
    %c0_i32 = arith.constant 0 : i32
    %0 = arith.cmpi eq, %arg1, %c0_i32 : i32
    %1 = arith.extui %0 : i1 to i32
    %c0_i32_0 = arith.constant 0 : i32
    %2 = arith.cmpi ne, %1, %c0_i32_0 : i32
    scf.if %2 {
      %cst_197 = arith.constant 0.000000e+00 : f32
      %388 = vector.broadcast %cst_197 : f32 to vector<8x32xf32>
      %c0_198 = arith.constant 0 : index
      %c0_199 = arith.constant 0 : index
      %389 = vector.load %arg7[%c0_198, %c0_199] : memref<8x32xf32, #tpu.memory_space<vmem>>, vector<8x32xf32>
      tpu.vector_store %arg7[%c0_198, %c0_199], %388 {strides = array<i32>} : memref<8x32xf32, #tpu.memory_space<vmem>>, vector<8x32xf32>,
      %cst_200 = arith.constant 0.000000e+00 : f32
      %390 = vector.broadcast %cst_200 : f32 to vector<8x32xf32>
      %c0_201 = arith.constant 0 : index
      %c0_202 = arith.constant 0 : index
      %391 = vector.load %arg8[%c0_201, %c0_202] : memref<8x32xf32, #tpu.memory_space<vmem>>, vector<8x32xf32>
      tpu.vector_store %arg8[%c0_201, %c0_202], %390 {strides = array<i32>} : memref<8x32xf32, #tpu.memory_space<vmem>>, vector<8x32xf32>,
    } else {
    }
    %c0 = arith.constant 0 : index
    %c0_1 = arith.constant 0 : index
    %c0_2 = arith.constant 0 : index
    %3 = vector.load %arg3[%c0, %c0_1, %c0_2] : memref<4x32x32xf32, #tpu.memory_space<vmem>>, vector<1x32x32xf32>
    %4 = vector.shape_cast %3 : vector<1x32x32xf32> to vector<32x32xf32>
    %c1 = arith.constant 1 : index
    %c0_3 = arith.constant 0 : index
    %c0_4 = arith.constant 0 : index
    %5 = vector.load %arg3[%c1, %c0_3, %c0_4] : memref<4x32x32xf32, #tpu.memory_space<vmem>>, vector<1x32x32xf32>
    %6 = vector.shape_cast %5 : vector<1x32x32xf32> to vector<32x32xf32>
    %c2 = arith.constant 2 : index
    %c0_5 = arith.constant 0 : index
    %c0_6 = arith.constant 0 : index
    %7 = vector.load %arg3[%c2, %c0_5, %c0_6] : memref<4x32x32xf32, #tpu.memory_space<vmem>>, vector<1x32x32xf32>
    %8 = vector.shape_cast %7 : vector<1x32x32xf32> to vector<32x32xf32>
    %c3 = arith.constant 3 : index
    %c0_7 = arith.constant 0 : index
    %c0_8 = arith.constant 0 : index
    %9 = vector.load %arg3[%c3, %c0_7, %c0_8] : memref<4x32x32xf32, #tpu.memory_space<vmem>>, vector<1x32x32xf32>
    %10 = vector.shape_cast %9 : vector<1x32x32xf32> to vector<32x32xf32>
    %c0_9 = arith.constant 0 : index
    %c0_10 = arith.constant 0 : index
    %11 = vector.load %arg7[%c0_9, %c0_10] : memref<8x32xf32, #tpu.memory_space<vmem>>, vector<8x32xf32>
    %c0_11 = arith.constant 0 : index
    %c0_12 = arith.constant 0 : index
    %12 = vector.load %arg8[%c0_11, %c0_12] : memref<8x32xf32, #tpu.memory_space<vmem>>, vector<8x32xf32>
    %c0_i32_13 = arith.constant 0 : i32
    %c0_14 = arith.constant 0 : index
    %13 = arith.index_cast %c0_i32_13 : i32 to index
    %c0_15 = arith.constant 0 : index
    %c0_16 = arith.constant 0 : index
    %14 = vector.load %arg2[%c0_14, %13, %c0_15, %c0_16] : memref<4x8x8x32xf32, #tpu.memory_space<vmem>>, vector<1x1x8x32xf32>
    %15 = vector.shape_cast %14 : vector<1x1x8x32xf32> to vector<8x32xf32>
    %cst = arith.constant dense<0.000000e+00> : vector<8x32xf32>
    %16 = tpu.matmul %11, %4, %cst {dimension_numbers = #tpu.dot_dimension_numbers<[1], [0], [0], [1], [0, 0, 1, 1], [], []>} : vector<8x32xf32>, vector<32x32xf32>, vector<8x32xf32> -> vector<8x32xf32>
    %17 = arith.addf %15, %16 : vector<8x32xf32>
    %c1_17 = arith.constant 1 : index
    %18 = arith.index_cast %c0_i32_13 : i32 to index
    %c0_18 = arith.constant 0 : index
    %c0_19 = arith.constant 0 : index
    %19 = vector.load %arg2[%c1_17, %18, %c0_18, %c0_19] : memref<4x8x8x32xf32, #tpu.memory_space<vmem>>, vector<1x1x8x32xf32>
    %20 = vector.shape_cast %19 : vector<1x1x8x32xf32> to vector<8x32xf32>
    %cst_20 = arith.constant dense<0.000000e+00> : vector<8x32xf32>
    %21 = tpu.matmul %11, %6, %cst_20 {dimension_numbers = #tpu.dot_dimension_numbers<[1], [0], [0], [1], [0, 0, 1, 1], [], []>} : vector<8x32xf32>, vector<32x32xf32>, vector<8x32xf32> -> vector<8x32xf32>
    %22 = arith.addf %20, %21 : vector<8x32xf32>
    %c2_21 = arith.constant 2 : index
    %23 = arith.index_cast %c0_i32_13 : i32 to index
    %c0_22 = arith.constant 0 : index
    %c0_23 = arith.constant 0 : index
    %24 = vector.load %arg2[%c2_21, %23, %c0_22, %c0_23] : memref<4x8x8x32xf32, #tpu.memory_space<vmem>>, vector<1x1x8x32xf32>
    %25 = vector.shape_cast %24 : vector<1x1x8x32xf32> to vector<8x32xf32>
    %cst_24 = arith.constant dense<0.000000e+00> : vector<8x32xf32>
    %26 = tpu.matmul %11, %8, %cst_24 {dimension_numbers = #tpu.dot_dimension_numbers<[1], [0], [0], [1], [0, 0, 1, 1], [], []>} : vector<8x32xf32>, vector<32x32xf32>, vector<8x32xf32> -> vector<8x32xf32>
    %27 = arith.addf %25, %26 : vector<8x32xf32>
    %c3_25 = arith.constant 3 : index
    %28 = arith.index_cast %c0_i32_13 : i32 to index
    %c0_26 = arith.constant 0 : index
    %c0_27 = arith.constant 0 : index
    %29 = vector.load %arg2[%c3_25, %28, %c0_26, %c0_27] : memref<4x8x8x32xf32, #tpu.memory_space<vmem>>, vector<1x1x8x32xf32>
    %30 = vector.shape_cast %29 : vector<1x1x8x32xf32> to vector<8x32xf32>
    %cst_28 = arith.constant dense<0.000000e+00> : vector<8x32xf32>
    %31 = tpu.matmul %11, %10, %cst_28 {dimension_numbers = #tpu.dot_dimension_numbers<[1], [0], [0], [1], [0, 0, 1, 1], [], []>} : vector<8x32xf32>, vector<32x32xf32>, vector<8x32xf32> -> vector<8x32xf32>
    %32 = arith.addf %30, %31 : vector<8x32xf32>
    %33 = arith.negf %17 : vector<8x32xf32>
    %34 = math.exp %33 : vector<8x32xf32>
    %cst_29 = arith.constant 1.000000e+00 : f32
    %35 = vector.broadcast %cst_29 : f32 to vector<8x32xf32>
    %36 = arith.addf %35, %34 : vector<8x32xf32>
    %37 = arith.divf %35, %36 : vector<8x32xf32>
    %38 = arith.negf %22 : vector<8x32xf32>
    %39 = math.exp %38 : vector<8x32xf32>
    %cst_30 = arith.constant 1.000000e+00 : f32
    %40 = vector.broadcast %cst_30 : f32 to vector<8x32xf32>
    %41 = arith.addf %40, %39 : vector<8x32xf32>
    %42 = arith.divf %40, %41 : vector<8x32xf32>
    %43 = math.tanh %27 : vector<8x32xf32>
    %44 = arith.negf %32 : vector<8x32xf32>
    %45 = math.exp %44 : vector<8x32xf32>
    %cst_31 = arith.constant 1.000000e+00 : f32
    %46 = vector.broadcast %cst_31 : f32 to vector<8x32xf32>
    %47 = arith.addf %46, %45 : vector<8x32xf32>
    %48 = arith.divf %46, %47 : vector<8x32xf32>
    %49 = arith.mulf %42, %12 : vector<8x32xf32>
    %50 = arith.mulf %37, %43 : vector<8x32xf32>
    %51 = arith.addf %49, %50 : vector<8x32xf32>
    %52 = math.tanh %51 : vector<8x32xf32>
    %53 = arith.mulf %48, %52 : vector<8x32xf32>
    %c8_i32 = arith.constant 8 : i32
    %54 = arith.muli %c0_i32_13, %c8_i32 : i32
    %55 = tpu.assume_multiple %54, 8 : i32
    %56 = arith.index_cast %55 : i32 to index
    %c0_32 = arith.constant 0 : index
    %57 = vector.load %arg9[%56, %c0_32] : memref<64x32xf32, #tpu.memory_space<vmem>>, vector<8x32xf32>
    tpu.vector_store %arg9[%56, %c0_32], %53 {strides = array<i32>} : memref<64x32xf32, #tpu.memory_space<vmem>>, vector<8x32xf32>,
    %c1_i32 = arith.constant 1 : i32
    %c0_33 = arith.constant 0 : index
    %58 = arith.index_cast %c1_i32 : i32 to index
    %c0_34 = arith.constant 0 : index
    %c0_35 = arith.constant 0 : index
    %59 = vector.load %arg2[%c0_33, %58, %c0_34, %c0_35] : memref<4x8x8x32xf32, #tpu.memory_space<vmem>>, vector<1x1x8x32xf32>
    %60 = vector.shape_cast %59 : vector<1x1x8x32xf32> to vector<8x32xf32>
    %cst_36 = arith.constant dense<0.000000e+00> : vector<8x32xf32>
    %61 = tpu.matmul %53, %4, %cst_36 {dimension_numbers = #tpu.dot_dimension_numbers<[1], [0], [0], [1], [0, 0, 1, 1], [], []>} : vector<8x32xf32>, vector<32x32xf32>, vector<8x32xf32> -> vector<8x32xf32>
    %62 = arith.addf %60, %61 : vector<8x32xf32>
    %c1_37 = arith.constant 1 : index
    %63 = arith.index_cast %c1_i32 : i32 to index
    %c0_38 = arith.constant 0 : index
    %c0_39 = arith.constant 0 : index
    %64 = vector.load %arg2[%c1_37, %63, %c0_38, %c0_39] : memref<4x8x8x32xf32, #tpu.memory_space<vmem>>, vector<1x1x8x32xf32>
    %65 = vector.shape_cast %64 : vector<1x1x8x32xf32> to vector<8x32xf32>
    %cst_40 = arith.constant dense<0.000000e+00> : vector<8x32xf32>
    %66 = tpu.matmul %53, %6, %cst_40 {dimension_numbers = #tpu.dot_dimension_numbers<[1], [0], [0], [1], [0, 0, 1, 1], [], []>} : vector<8x32xf32>, vector<32x32xf32>, vector<8x32xf32> -> vector<8x32xf32>
    %67 = arith.addf %65, %66 : vector<8x32xf32>
    %c2_41 = arith.constant 2 : index
    %68 = arith.index_cast %c1_i32 : i32 to index
    %c0_42 = arith.constant 0 : index
    %c0_43 = arith.constant 0 : index
    %69 = vector.load %arg2[%c2_41, %68, %c0_42, %c0_43] : memref<4x8x8x32xf32, #tpu.memory_space<vmem>>, vector<1x1x8x32xf32>
    %70 = vector.shape_cast %69 : vector<1x1x8x32xf32> to vector<8x32xf32>
    %cst_44 = arith.constant dense<0.000000e+00> : vector<8x32xf32>
    %71 = tpu.matmul %53, %8, %cst_44 {dimension_numbers = #tpu.dot_dimension_numbers<[1], [0], [0], [1], [0, 0, 1, 1], [], []>} : vector<8x32xf32>, vector<32x32xf32>, vector<8x32xf32> -> vector<8x32xf32>
    %72 = arith.addf %70, %71 : vector<8x32xf32>
    %c3_45 = arith.constant 3 : index
    %73 = arith.index_cast %c1_i32 : i32 to index
    %c0_46 = arith.constant 0 : index
    %c0_47 = arith.constant 0 : index
    %74 = vector.load %arg2[%c3_45, %73, %c0_46, %c0_47] : memref<4x8x8x32xf32, #tpu.memory_space<vmem>>, vector<1x1x8x32xf32>
    %75 = vector.shape_cast %74 : vector<1x1x8x32xf32> to vector<8x32xf32>
    %cst_48 = arith.constant dense<0.000000e+00> : vector<8x32xf32>
    %76 = tpu.matmul %53, %10, %cst_48 {dimension_numbers = #tpu.dot_dimension_numbers<[1], [0], [0], [1], [0, 0, 1, 1], [], []>} : vector<8x32xf32>, vector<32x32xf32>, vector<8x32xf32> -> vector<8x32xf32>
    %77 = arith.addf %75, %76 : vector<8x32xf32>
    %78 = arith.negf %62 : vector<8x32xf32>
    %79 = math.exp %78 : vector<8x32xf32>
    %cst_49 = arith.constant 1.000000e+00 : f32
    %80 = vector.broadcast %cst_49 : f32 to vector<8x32xf32>
    %81 = arith.addf %80, %79 : vector<8x32xf32>
    %82 = arith.divf %80, %81 : vector<8x32xf32>
    %83 = arith.negf %67 : vector<8x32xf32>
    %84 = math.exp %83 : vector<8x32xf32>
    %cst_50 = arith.constant 1.000000e+00 : f32
    %85 = vector.broadcast %cst_50 : f32 to vector<8x32xf32>
    %86 = arith.addf %85, %84 : vector<8x32xf32>
    %87 = arith.divf %85, %86 : vector<8x32xf32>
    %88 = math.tanh %72 : vector<8x32xf32>
    %89 = arith.negf %77 : vector<8x32xf32>
    %90 = math.exp %89 : vector<8x32xf32>
    %cst_51 = arith.constant 1.000000e+00 : f32
    %91 = vector.broadcast %cst_51 : f32 to vector<8x32xf32>
    %92 = arith.addf %91, %90 : vector<8x32xf32>
    %93 = arith.divf %91, %92 : vector<8x32xf32>
    %94 = arith.mulf %87, %51 : vector<8x32xf32>
    %95 = arith.mulf %82, %88 : vector<8x32xf32>
    %96 = arith.addf %94, %95 : vector<8x32xf32>
    %97 = math.tanh %96 : vector<8x32xf32>
    %98 = arith.mulf %93, %97 : vector<8x32xf32>
    %c8_i32_52 = arith.constant 8 : i32
    %99 = arith.muli %c1_i32, %c8_i32_52 : i32
    %100 = tpu.assume_multiple %99, 8 : i32
    %101 = arith.index_cast %100 : i32 to index
    %c0_53 = arith.constant 0 : index
    %102 = vector.load %arg9[%101, %c0_53] : memref<64x32xf32, #tpu.memory_space<vmem>>, vector<8x32xf32>
    tpu.vector_store %arg9[%101, %c0_53], %98 {strides = array<i32>} : memref<64x32xf32, #tpu.memory_space<vmem>>, vector<8x32xf32>,
    %c2_i32 = arith.constant 2 : i32
    %c0_54 = arith.constant 0 : index
    %103 = arith.index_cast %c2_i32 : i32 to index
    %c0_55 = arith.constant 0 : index
    %c0_56 = arith.constant 0 : index
    %104 = vector.load %arg2[%c0_54, %103, %c0_55, %c0_56] : memref<4x8x8x32xf32, #tpu.memory_space<vmem>>, vector<1x1x8x32xf32>
    %105 = vector.shape_cast %104 : vector<1x1x8x32xf32> to vector<8x32xf32>
    %cst_57 = arith.constant dense<0.000000e+00> : vector<8x32xf32>
    %106 = tpu.matmul %98, %4, %cst_57 {dimension_numbers = #tpu.dot_dimension_numbers<[1], [0], [0], [1], [0, 0, 1, 1], [], []>} : vector<8x32xf32>, vector<32x32xf32>, vector<8x32xf32> -> vector<8x32xf32>
    %107 = arith.addf %105, %106 : vector<8x32xf32>
    %c1_58 = arith.constant 1 : index
    %108 = arith.index_cast %c2_i32 : i32 to index
    %c0_59 = arith.constant 0 : index
    %c0_60 = arith.constant 0 : index
    %109 = vector.load %arg2[%c1_58, %108, %c0_59, %c0_60] : memref<4x8x8x32xf32, #tpu.memory_space<vmem>>, vector<1x1x8x32xf32>
    %110 = vector.shape_cast %109 : vector<1x1x8x32xf32> to vector<8x32xf32>
    %cst_61 = arith.constant dense<0.000000e+00> : vector<8x32xf32>
    %111 = tpu.matmul %98, %6, %cst_61 {dimension_numbers = #tpu.dot_dimension_numbers<[1], [0], [0], [1], [0, 0, 1, 1], [], []>} : vector<8x32xf32>, vector<32x32xf32>, vector<8x32xf32> -> vector<8x32xf32>
    %112 = arith.addf %110, %111 : vector<8x32xf32>
    %c2_62 = arith.constant 2 : index
    %113 = arith.index_cast %c2_i32 : i32 to index
    %c0_63 = arith.constant 0 : index
    %c0_64 = arith.constant 0 : index
    %114 = vector.load %arg2[%c2_62, %113, %c0_63, %c0_64] : memref<4x8x8x32xf32, #tpu.memory_space<vmem>>, vector<1x1x8x32xf32>
    %115 = vector.shape_cast %114 : vector<1x1x8x32xf32> to vector<8x32xf32>
    %cst_65 = arith.constant dense<0.000000e+00> : vector<8x32xf32>
    %116 = tpu.matmul %98, %8, %cst_65 {dimension_numbers = #tpu.dot_dimension_numbers<[1], [0], [0], [1], [0, 0, 1, 1], [], []>} : vector<8x32xf32>, vector<32x32xf32>, vector<8x32xf32> -> vector<8x32xf32>
    %117 = arith.addf %115, %116 : vector<8x32xf32>
    %c3_66 = arith.constant 3 : index
    %118 = arith.index_cast %c2_i32 : i32 to index
    %c0_67 = arith.constant 0 : index
    %c0_68 = arith.constant 0 : index
    %119 = vector.load %arg2[%c3_66, %118, %c0_67, %c0_68] : memref<4x8x8x32xf32, #tpu.memory_space<vmem>>, vector<1x1x8x32xf32>
    %120 = vector.shape_cast %119 : vector<1x1x8x32xf32> to vector<8x32xf32>
    %cst_69 = arith.constant dense<0.000000e+00> : vector<8x32xf32>
    %121 = tpu.matmul %98, %10, %cst_69 {dimension_numbers = #tpu.dot_dimension_numbers<[1], [0], [0], [1], [0, 0, 1, 1], [], []>} : vector<8x32xf32>, vector<32x32xf32>, vector<8x32xf32> -> vector<8x32xf32>
    %122 = arith.addf %120, %121 : vector<8x32xf32>
    %123 = arith.negf %107 : vector<8x32xf32>
    %124 = math.exp %123 : vector<8x32xf32>
    %cst_70 = arith.constant 1.000000e+00 : f32
    %125 = vector.broadcast %cst_70 : f32 to vector<8x32xf32>
    %126 = arith.addf %125, %124 : vector<8x32xf32>
    %127 = arith.divf %125, %126 : vector<8x32xf32>
    %128 = arith.negf %112 : vector<8x32xf32>
    %129 = math.exp %128 : vector<8x32xf32>
    %cst_71 = arith.constant 1.000000e+00 : f32
    %130 = vector.broadcast %cst_71 : f32 to vector<8x32xf32>
    %131 = arith.addf %130, %129 : vector<8x32xf32>
    %132 = arith.divf %130, %131 : vector<8x32xf32>
    %133 = math.tanh %117 : vector<8x32xf32>
    %134 = arith.negf %122 : vector<8x32xf32>
    %135 = math.exp %134 : vector<8x32xf32>
    %cst_72 = arith.constant 1.000000e+00 : f32
    %136 = vector.broadcast %cst_72 : f32 to vector<8x32xf32>
    %137 = arith.addf %136, %135 : vector<8x32xf32>
    %138 = arith.divf %136, %137 : vector<8x32xf32>
    %139 = arith.mulf %132, %96 : vector<8x32xf32>
    %140 = arith.mulf %127, %133 : vector<8x32xf32>
    %141 = arith.addf %139, %140 : vector<8x32xf32>
    %142 = math.tanh %141 : vector<8x32xf32>
    %143 = arith.mulf %138, %142 : vector<8x32xf32>
    %c8_i32_73 = arith.constant 8 : i32
    %144 = arith.muli %c2_i32, %c8_i32_73 : i32
    %145 = tpu.assume_multiple %144, 8 : i32
    %146 = arith.index_cast %145 : i32 to index
    %c0_74 = arith.constant 0 : index
    %147 = vector.load %arg9[%146, %c0_74] : memref<64x32xf32, #tpu.memory_space<vmem>>, vector<8x32xf32>
    tpu.vector_store %arg9[%146, %c0_74], %143 {strides = array<i32>} : memref<64x32xf32, #tpu.memory_space<vmem>>, vector<8x32xf32>,
    %c3_i32 = arith.constant 3 : i32
    %c0_75 = arith.constant 0 : index
    %148 = arith.index_cast %c3_i32 : i32 to index
    %c0_76 = arith.constant 0 : index
    %c0_77 = arith.constant 0 : index
    %149 = vector.load %arg2[%c0_75, %148, %c0_76, %c0_77] : memref<4x8x8x32xf32, #tpu.memory_space<vmem>>, vector<1x1x8x32xf32>
    %150 = vector.shape_cast %149 : vector<1x1x8x32xf32> to vector<8x32xf32>
    %cst_78 = arith.constant dense<0.000000e+00> : vector<8x32xf32>
    %151 = tpu.matmul %143, %4, %cst_78 {dimension_numbers = #tpu.dot_dimension_numbers<[1], [0], [0], [1], [0, 0, 1, 1], [], []>} : vector<8x32xf32>, vector<32x32xf32>, vector<8x32xf32> -> vector<8x32xf32>
    %152 = arith.addf %150, %151 : vector<8x32xf32>
    %c1_79 = arith.constant 1 : index
    %153 = arith.index_cast %c3_i32 : i32 to index
    %c0_80 = arith.constant 0 : index
    %c0_81 = arith.constant 0 : index
    %154 = vector.load %arg2[%c1_79, %153, %c0_80, %c0_81] : memref<4x8x8x32xf32, #tpu.memory_space<vmem>>, vector<1x1x8x32xf32>
    %155 = vector.shape_cast %154 : vector<1x1x8x32xf32> to vector<8x32xf32>
    %cst_82 = arith.constant dense<0.000000e+00> : vector<8x32xf32>
    %156 = tpu.matmul %143, %6, %cst_82 {dimension_numbers = #tpu.dot_dimension_numbers<[1], [0], [0], [1], [0, 0, 1, 1], [], []>} : vector<8x32xf32>, vector<32x32xf32>, vector<8x32xf32> -> vector<8x32xf32>
    %157 = arith.addf %155, %156 : vector<8x32xf32>
    %c2_83 = arith.constant 2 : index
    %158 = arith.index_cast %c3_i32 : i32 to index
    %c0_84 = arith.constant 0 : index
    %c0_85 = arith.constant 0 : index
    %159 = vector.load %arg2[%c2_83, %158, %c0_84, %c0_85] : memref<4x8x8x32xf32, #tpu.memory_space<vmem>>, vector<1x1x8x32xf32>
    %160 = vector.shape_cast %159 : vector<1x1x8x32xf32> to vector<8x32xf32>
    %cst_86 = arith.constant dense<0.000000e+00> : vector<8x32xf32>
    %161 = tpu.matmul %143, %8, %cst_86 {dimension_numbers = #tpu.dot_dimension_numbers<[1], [0], [0], [1], [0, 0, 1, 1], [], []>} : vector<8x32xf32>, vector<32x32xf32>, vector<8x32xf32> -> vector<8x32xf32>
    %162 = arith.addf %160, %161 : vector<8x32xf32>
    %c3_87 = arith.constant 3 : index
    %163 = arith.index_cast %c3_i32 : i32 to index
    %c0_88 = arith.constant 0 : index
    %c0_89 = arith.constant 0 : index
    %164 = vector.load %arg2[%c3_87, %163, %c0_88, %c0_89] : memref<4x8x8x32xf32, #tpu.memory_space<vmem>>, vector<1x1x8x32xf32>
    %165 = vector.shape_cast %164 : vector<1x1x8x32xf32> to vector<8x32xf32>
    %cst_90 = arith.constant dense<0.000000e+00> : vector<8x32xf32>
    %166 = tpu.matmul %143, %10, %cst_90 {dimension_numbers = #tpu.dot_dimension_numbers<[1], [0], [0], [1], [0, 0, 1, 1], [], []>} : vector<8x32xf32>, vector<32x32xf32>, vector<8x32xf32> -> vector<8x32xf32>
    %167 = arith.addf %165, %166 : vector<8x32xf32>
    %168 = arith.negf %152 : vector<8x32xf32>
    %169 = math.exp %168 : vector<8x32xf32>
    %cst_91 = arith.constant 1.000000e+00 : f32
    %170 = vector.broadcast %cst_91 : f32 to vector<8x32xf32>
    %171 = arith.addf %170, %169 : vector<8x32xf32>
    %172 = arith.divf %170, %171 : vector<8x32xf32>
    %173 = arith.negf %157 : vector<8x32xf32>
    %174 = math.exp %173 : vector<8x32xf32>
    %cst_92 = arith.constant 1.000000e+00 : f32
    %175 = vector.broadcast %cst_92 : f32 to vector<8x32xf32>
    %176 = arith.addf %175, %174 : vector<8x32xf32>
    %177 = arith.divf %175, %176 : vector<8x32xf32>
    %178 = math.tanh %162 : vector<8x32xf32>
    %179 = arith.negf %167 : vector<8x32xf32>
    %180 = math.exp %179 : vector<8x32xf32>
    %cst_93 = arith.constant 1.000000e+00 : f32
    %181 = vector.broadcast %cst_93 : f32 to vector<8x32xf32>
    %182 = arith.addf %181, %180 : vector<8x32xf32>
    %183 = arith.divf %181, %182 : vector<8x32xf32>
    %184 = arith.mulf %177, %141 : vector<8x32xf32>
    %185 = arith.mulf %172, %178 : vector<8x32xf32>
    %186 = arith.addf %184, %185 : vector<8x32xf32>
    %187 = math.tanh %186 : vector<8x32xf32>
    %188 = arith.mulf %183, %187 : vector<8x32xf32>
    %c8_i32_94 = arith.constant 8 : i32
    %189 = arith.muli %c3_i32, %c8_i32_94 : i32
    %190 = tpu.assume_multiple %189, 8 : i32
    %191 = arith.index_cast %190 : i32 to index
    %c0_95 = arith.constant 0 : index
    %192 = vector.load %arg9[%191, %c0_95] : memref<64x32xf32, #tpu.memory_space<vmem>>, vector<8x32xf32>
    tpu.vector_store %arg9[%191, %c0_95], %188 {strides = array<i32>} : memref<64x32xf32, #tpu.memory_space<vmem>>, vector<8x32xf32>,
    %c4_i32 = arith.constant 4 : i32
    %c0_96 = arith.constant 0 : index
    %193 = arith.index_cast %c4_i32 : i32 to index
    %c0_97 = arith.constant 0 : index
    %c0_98 = arith.constant 0 : index
    %194 = vector.load %arg2[%c0_96, %193, %c0_97, %c0_98] : memref<4x8x8x32xf32, #tpu.memory_space<vmem>>, vector<1x1x8x32xf32>
    %195 = vector.shape_cast %194 : vector<1x1x8x32xf32> to vector<8x32xf32>
    %cst_99 = arith.constant dense<0.000000e+00> : vector<8x32xf32>
    %196 = tpu.matmul %188, %4, %cst_99 {dimension_numbers = #tpu.dot_dimension_numbers<[1], [0], [0], [1], [0, 0, 1, 1], [], []>} : vector<8x32xf32>, vector<32x32xf32>, vector<8x32xf32> -> vector<8x32xf32>
    %197 = arith.addf %195, %196 : vector<8x32xf32>
    %c1_100 = arith.constant 1 : index
    %198 = arith.index_cast %c4_i32 : i32 to index
    %c0_101 = arith.constant 0 : index
    %c0_102 = arith.constant 0 : index
    %199 = vector.load %arg2[%c1_100, %198, %c0_101, %c0_102] : memref<4x8x8x32xf32, #tpu.memory_space<vmem>>, vector<1x1x8x32xf32>
    %200 = vector.shape_cast %199 : vector<1x1x8x32xf32> to vector<8x32xf32>
    %cst_103 = arith.constant dense<0.000000e+00> : vector<8x32xf32>
    %201 = tpu.matmul %188, %6, %cst_103 {dimension_numbers = #tpu.dot_dimension_numbers<[1], [0], [0], [1], [0, 0, 1, 1], [], []>} : vector<8x32xf32>, vector<32x32xf32>, vector<8x32xf32> -> vector<8x32xf32>
    %202 = arith.addf %200, %201 : vector<8x32xf32>
    %c2_104 = arith.constant 2 : index
    %203 = arith.index_cast %c4_i32 : i32 to index
    %c0_105 = arith.constant 0 : index
    %c0_106 = arith.constant 0 : index
    %204 = vector.load %arg2[%c2_104, %203, %c0_105, %c0_106] : memref<4x8x8x32xf32, #tpu.memory_space<vmem>>, vector<1x1x8x32xf32>
    %205 = vector.shape_cast %204 : vector<1x1x8x32xf32> to vector<8x32xf32>
    %cst_107 = arith.constant dense<0.000000e+00> : vector<8x32xf32>
    %206 = tpu.matmul %188, %8, %cst_107 {dimension_numbers = #tpu.dot_dimension_numbers<[1], [0], [0], [1], [0, 0, 1, 1], [], []>} : vector<8x32xf32>, vector<32x32xf32>, vector<8x32xf32> -> vector<8x32xf32>
    %207 = arith.addf %205, %206 : vector<8x32xf32>
    %c3_108 = arith.constant 3 : index
    %208 = arith.index_cast %c4_i32 : i32 to index
    %c0_109 = arith.constant 0 : index
    %c0_110 = arith.constant 0 : index
    %209 = vector.load %arg2[%c3_108, %208, %c0_109, %c0_110] : memref<4x8x8x32xf32, #tpu.memory_space<vmem>>, vector<1x1x8x32xf32>
    %210 = vector.shape_cast %209 : vector<1x1x8x32xf32> to vector<8x32xf32>
    %cst_111 = arith.constant dense<0.000000e+00> : vector<8x32xf32>
    %211 = tpu.matmul %188, %10, %cst_111 {dimension_numbers = #tpu.dot_dimension_numbers<[1], [0], [0], [1], [0, 0, 1, 1], [], []>} : vector<8x32xf32>, vector<32x32xf32>, vector<8x32xf32> -> vector<8x32xf32>
    %212 = arith.addf %210, %211 : vector<8x32xf32>
    %213 = arith.negf %197 : vector<8x32xf32>
    %214 = math.exp %213 : vector<8x32xf32>
    %cst_112 = arith.constant 1.000000e+00 : f32
    %215 = vector.broadcast %cst_112 : f32 to vector<8x32xf32>
    %216 = arith.addf %215, %214 : vector<8x32xf32>
    %217 = arith.divf %215, %216 : vector<8x32xf32>
    %218 = arith.negf %202 : vector<8x32xf32>
    %219 = math.exp %218 : vector<8x32xf32>
    %cst_113 = arith.constant 1.000000e+00 : f32
    %220 = vector.broadcast %cst_113 : f32 to vector<8x32xf32>
    %221 = arith.addf %220, %219 : vector<8x32xf32>
    %222 = arith.divf %220, %221 : vector<8x32xf32>
    %223 = math.tanh %207 : vector<8x32xf32>
    %224 = arith.negf %212 : vector<8x32xf32>
    %225 = math.exp %224 : vector<8x32xf32>
    %cst_114 = arith.constant 1.000000e+00 : f32
    %226 = vector.broadcast %cst_114 : f32 to vector<8x32xf32>
    %227 = arith.addf %226, %225 : vector<8x32xf32>
    %228 = arith.divf %226, %227 : vector<8x32xf32>
    %229 = arith.mulf %222, %186 : vector<8x32xf32>
    %230 = arith.mulf %217, %223 : vector<8x32xf32>
    %231 = arith.addf %229, %230 : vector<8x32xf32>
    %232 = math.tanh %231 : vector<8x32xf32>
    %233 = arith.mulf %228, %232 : vector<8x32xf32>
    %c8_i32_115 = arith.constant 8 : i32
    %234 = arith.muli %c4_i32, %c8_i32_115 : i32
    %235 = tpu.assume_multiple %234, 8 : i32
    %236 = arith.index_cast %235 : i32 to index
    %c0_116 = arith.constant 0 : index
    %237 = vector.load %arg9[%236, %c0_116] : memref<64x32xf32, #tpu.memory_space<vmem>>, vector<8x32xf32>
    tpu.vector_store %arg9[%236, %c0_116], %233 {strides = array<i32>} : memref<64x32xf32, #tpu.memory_space<vmem>>, vector<8x32xf32>,
    %c5_i32 = arith.constant 5 : i32
    %c0_117 = arith.constant 0 : index
    %238 = arith.index_cast %c5_i32 : i32 to index
    %c0_118 = arith.constant 0 : index
    %c0_119 = arith.constant 0 : index
    %239 = vector.load %arg2[%c0_117, %238, %c0_118, %c0_119] : memref<4x8x8x32xf32, #tpu.memory_space<vmem>>, vector<1x1x8x32xf32>
    %240 = vector.shape_cast %239 : vector<1x1x8x32xf32> to vector<8x32xf32>
    %cst_120 = arith.constant dense<0.000000e+00> : vector<8x32xf32>
    %241 = tpu.matmul %233, %4, %cst_120 {dimension_numbers = #tpu.dot_dimension_numbers<[1], [0], [0], [1], [0, 0, 1, 1], [], []>} : vector<8x32xf32>, vector<32x32xf32>, vector<8x32xf32> -> vector<8x32xf32>
    %242 = arith.addf %240, %241 : vector<8x32xf32>
    %c1_121 = arith.constant 1 : index
    %243 = arith.index_cast %c5_i32 : i32 to index
    %c0_122 = arith.constant 0 : index
    %c0_123 = arith.constant 0 : index
    %244 = vector.load %arg2[%c1_121, %243, %c0_122, %c0_123] : memref<4x8x8x32xf32, #tpu.memory_space<vmem>>, vector<1x1x8x32xf32>
    %245 = vector.shape_cast %244 : vector<1x1x8x32xf32> to vector<8x32xf32>
    %cst_124 = arith.constant dense<0.000000e+00> : vector<8x32xf32>
    %246 = tpu.matmul %233, %6, %cst_124 {dimension_numbers = #tpu.dot_dimension_numbers<[1], [0], [0], [1], [0, 0, 1, 1], [], []>} : vector<8x32xf32>, vector<32x32xf32>, vector<8x32xf32> -> vector<8x32xf32>
    %247 = arith.addf %245, %246 : vector<8x32xf32>
    %c2_125 = arith.constant 2 : index
    %248 = arith.index_cast %c5_i32 : i32 to index
    %c0_126 = arith.constant 0 : index
    %c0_127 = arith.constant 0 : index
    %249 = vector.load %arg2[%c2_125, %248, %c0_126, %c0_127] : memref<4x8x8x32xf32, #tpu.memory_space<vmem>>, vector<1x1x8x32xf32>
    %250 = vector.shape_cast %249 : vector<1x1x8x32xf32> to vector<8x32xf32>
    %cst_128 = arith.constant dense<0.000000e+00> : vector<8x32xf32>
    %251 = tpu.matmul %233, %8, %cst_128 {dimension_numbers = #tpu.dot_dimension_numbers<[1], [0], [0], [1], [0, 0, 1, 1], [], []>} : vector<8x32xf32>, vector<32x32xf32>, vector<8x32xf32> -> vector<8x32xf32>
    %252 = arith.addf %250, %251 : vector<8x32xf32>
    %c3_129 = arith.constant 3 : index
    %253 = arith.index_cast %c5_i32 : i32 to index
    %c0_130 = arith.constant 0 : index
    %c0_131 = arith.constant 0 : index
    %254 = vector.load %arg2[%c3_129, %253, %c0_130, %c0_131] : memref<4x8x8x32xf32, #tpu.memory_space<vmem>>, vector<1x1x8x32xf32>
    %255 = vector.shape_cast %254 : vector<1x1x8x32xf32> to vector<8x32xf32>
    %cst_132 = arith.constant dense<0.000000e+00> : vector<8x32xf32>
    %256 = tpu.matmul %233, %10, %cst_132 {dimension_numbers = #tpu.dot_dimension_numbers<[1], [0], [0], [1], [0, 0, 1, 1], [], []>} : vector<8x32xf32>, vector<32x32xf32>, vector<8x32xf32> -> vector<8x32xf32>
    %257 = arith.addf %255, %256 : vector<8x32xf32>
    %258 = arith.negf %242 : vector<8x32xf32>
    %259 = math.exp %258 : vector<8x32xf32>
    %cst_133 = arith.constant 1.000000e+00 : f32
    %260 = vector.broadcast %cst_133 : f32 to vector<8x32xf32>
    %261 = arith.addf %260, %259 : vector<8x32xf32>
    %262 = arith.divf %260, %261 : vector<8x32xf32>
    %263 = arith.negf %247 : vector<8x32xf32>
    %264 = math.exp %263 : vector<8x32xf32>
    %cst_134 = arith.constant 1.000000e+00 : f32
    %265 = vector.broadcast %cst_134 : f32 to vector<8x32xf32>
    %266 = arith.addf %265, %264 : vector<8x32xf32>
    %267 = arith.divf %265, %266 : vector<8x32xf32>
    %268 = math.tanh %252 : vector<8x32xf32>
    %269 = arith.negf %257 : vector<8x32xf32>
    %270 = math.exp %269 : vector<8x32xf32>
    %cst_135 = arith.constant 1.000000e+00 : f32
    %271 = vector.broadcast %cst_135 : f32 to vector<8x32xf32>
    %272 = arith.addf %271, %270 : vector<8x32xf32>
    %273 = arith.divf %271, %272 : vector<8x32xf32>
    %274 = arith.mulf %267, %231 : vector<8x32xf32>
    %275 = arith.mulf %262, %268 : vector<8x32xf32>
    %276 = arith.addf %274, %275 : vector<8x32xf32>
    %277 = math.tanh %276 : vector<8x32xf32>
    %278 = arith.mulf %273, %277 : vector<8x32xf32>
    %c8_i32_136 = arith.constant 8 : i32
    %279 = arith.muli %c5_i32, %c8_i32_136 : i32
    %280 = tpu.assume_multiple %279, 8 : i32
    %281 = arith.index_cast %280 : i32 to index
    %c0_137 = arith.constant 0 : index
    %282 = vector.load %arg9[%281, %c0_137] : memref<64x32xf32, #tpu.memory_space<vmem>>, vector<8x32xf32>
    tpu.vector_store %arg9[%281, %c0_137], %278 {strides = array<i32>} : memref<64x32xf32, #tpu.memory_space<vmem>>, vector<8x32xf32>,
    %c6_i32 = arith.constant 6 : i32
    %c0_138 = arith.constant 0 : index
    %283 = arith.index_cast %c6_i32 : i32 to index
    %c0_139 = arith.constant 0 : index
    %c0_140 = arith.constant 0 : index
    %284 = vector.load %arg2[%c0_138, %283, %c0_139, %c0_140] : memref<4x8x8x32xf32, #tpu.memory_space<vmem>>, vector<1x1x8x32xf32>
    %285 = vector.shape_cast %284 : vector<1x1x8x32xf32> to vector<8x32xf32>
    %cst_141 = arith.constant dense<0.000000e+00> : vector<8x32xf32>
    %286 = tpu.matmul %278, %4, %cst_141 {dimension_numbers = #tpu.dot_dimension_numbers<[1], [0], [0], [1], [0, 0, 1, 1], [], []>} : vector<8x32xf32>, vector<32x32xf32>, vector<8x32xf32> -> vector<8x32xf32>
    %287 = arith.addf %285, %286 : vector<8x32xf32>
    %c1_142 = arith.constant 1 : index
    %288 = arith.index_cast %c6_i32 : i32 to index
    %c0_143 = arith.constant 0 : index
    %c0_144 = arith.constant 0 : index
    %289 = vector.load %arg2[%c1_142, %288, %c0_143, %c0_144] : memref<4x8x8x32xf32, #tpu.memory_space<vmem>>, vector<1x1x8x32xf32>
    %290 = vector.shape_cast %289 : vector<1x1x8x32xf32> to vector<8x32xf32>
    %cst_145 = arith.constant dense<0.000000e+00> : vector<8x32xf32>
    %291 = tpu.matmul %278, %6, %cst_145 {dimension_numbers = #tpu.dot_dimension_numbers<[1], [0], [0], [1], [0, 0, 1, 1], [], []>} : vector<8x32xf32>, vector<32x32xf32>, vector<8x32xf32> -> vector<8x32xf32>
    %292 = arith.addf %290, %291 : vector<8x32xf32>
    %c2_146 = arith.constant 2 : index
    %293 = arith.index_cast %c6_i32 : i32 to index
    %c0_147 = arith.constant 0 : index
    %c0_148 = arith.constant 0 : index
    %294 = vector.load %arg2[%c2_146, %293, %c0_147, %c0_148] : memref<4x8x8x32xf32, #tpu.memory_space<vmem>>, vector<1x1x8x32xf32>
    %295 = vector.shape_cast %294 : vector<1x1x8x32xf32> to vector<8x32xf32>
    %cst_149 = arith.constant dense<0.000000e+00> : vector<8x32xf32>
    %296 = tpu.matmul %278, %8, %cst_149 {dimension_numbers = #tpu.dot_dimension_numbers<[1], [0], [0], [1], [0, 0, 1, 1], [], []>} : vector<8x32xf32>, vector<32x32xf32>, vector<8x32xf32> -> vector<8x32xf32>
    %297 = arith.addf %295, %296 : vector<8x32xf32>
    %c3_150 = arith.constant 3 : index
    %298 = arith.index_cast %c6_i32 : i32 to index
    %c0_151 = arith.constant 0 : index
    %c0_152 = arith.constant 0 : index
    %299 = vector.load %arg2[%c3_150, %298, %c0_151, %c0_152] : memref<4x8x8x32xf32, #tpu.memory_space<vmem>>, vector<1x1x8x32xf32>
    %300 = vector.shape_cast %299 : vector<1x1x8x32xf32> to vector<8x32xf32>
    %cst_153 = arith.constant dense<0.000000e+00> : vector<8x32xf32>
    %301 = tpu.matmul %278, %10, %cst_153 {dimension_numbers = #tpu.dot_dimension_numbers<[1], [0], [0], [1], [0, 0, 1, 1], [], []>} : vector<8x32xf32>, vector<32x32xf32>, vector<8x32xf32> -> vector<8x32xf32>
    %302 = arith.addf %300, %301 : vector<8x32xf32>
    %303 = arith.negf %287 : vector<8x32xf32>
    %304 = math.exp %303 : vector<8x32xf32>
    %cst_154 = arith.constant 1.000000e+00 : f32
    %305 = vector.broadcast %cst_154 : f32 to vector<8x32xf32>
    %306 = arith.addf %305, %304 : vector<8x32xf32>
    %307 = arith.divf %305, %306 : vector<8x32xf32>
    %308 = arith.negf %292 : vector<8x32xf32>
    %309 = math.exp %308 : vector<8x32xf32>
    %cst_155 = arith.constant 1.000000e+00 : f32
    %310 = vector.broadcast %cst_155 : f32 to vector<8x32xf32>
    %311 = arith.addf %310, %309 : vector<8x32xf32>
    %312 = arith.divf %310, %311 : vector<8x32xf32>
    %313 = math.tanh %297 : vector<8x32xf32>
    %314 = arith.negf %302 : vector<8x32xf32>
    %315 = math.exp %314 : vector<8x32xf32>
    %cst_156 = arith.constant 1.000000e+00 : f32
    %316 = vector.broadcast %cst_156 : f32 to vector<8x32xf32>
    %317 = arith.addf %316, %315 : vector<8x32xf32>
    %318 = arith.divf %316, %317 : vector<8x32xf32>
    %319 = arith.mulf %312, %276 : vector<8x32xf32>
    %320 = arith.mulf %307, %313 : vector<8x32xf32>
    %321 = arith.addf %319, %320 : vector<8x32xf32>
    %322 = math.tanh %321 : vector<8x32xf32>
    %323 = arith.mulf %318, %322 : vector<8x32xf32>
    %c8_i32_157 = arith.constant 8 : i32
    %324 = arith.muli %c6_i32, %c8_i32_157 : i32
    %325 = tpu.assume_multiple %324, 8 : i32
    %326 = arith.index_cast %325 : i32 to index
    %c0_158 = arith.constant 0 : index
    %327 = vector.load %arg9[%326, %c0_158] : memref<64x32xf32, #tpu.memory_space<vmem>>, vector<8x32xf32>
    tpu.vector_store %arg9[%326, %c0_158], %323 {strides = array<i32>} : memref<64x32xf32, #tpu.memory_space<vmem>>, vector<8x32xf32>,
    %c7_i32 = arith.constant 7 : i32
    %c0_159 = arith.constant 0 : index
    %328 = arith.index_cast %c7_i32 : i32 to index
    %c0_160 = arith.constant 0 : index
    %c0_161 = arith.constant 0 : index
    %329 = vector.load %arg2[%c0_159, %328, %c0_160, %c0_161] : memref<4x8x8x32xf32, #tpu.memory_space<vmem>>, vector<1x1x8x32xf32>
    %330 = vector.shape_cast %329 : vector<1x1x8x32xf32> to vector<8x32xf32>
    %cst_162 = arith.constant dense<0.000000e+00> : vector<8x32xf32>
    %331 = tpu.matmul %323, %4, %cst_162 {dimension_numbers = #tpu.dot_dimension_numbers<[1], [0], [0], [1], [0, 0, 1, 1], [], []>} : vector<8x32xf32>, vector<32x32xf32>, vector<8x32xf32> -> vector<8x32xf32>
    %332 = arith.addf %330, %331 : vector<8x32xf32>
    %c1_163 = arith.constant 1 : index
    %333 = arith.index_cast %c7_i32 : i32 to index
    %c0_164 = arith.constant 0 : index
    %c0_165 = arith.constant 0 : index
    %334 = vector.load %arg2[%c1_163, %333, %c0_164, %c0_165] : memref<4x8x8x32xf32, #tpu.memory_space<vmem>>, vector<1x1x8x32xf32>
    %335 = vector.shape_cast %334 : vector<1x1x8x32xf32> to vector<8x32xf32>
    %cst_166 = arith.constant dense<0.000000e+00> : vector<8x32xf32>
    %336 = tpu.matmul %323, %6, %cst_166 {dimension_numbers = #tpu.dot_dimension_numbers<[1], [0], [0], [1], [0, 0, 1, 1], [], []>} : vector<8x32xf32>, vector<32x32xf32>, vector<8x32xf32> -> vector<8x32xf32>
    %337 = arith.addf %335, %336 : vector<8x32xf32>
    %c2_167 = arith.constant 2 : index
    %338 = arith.index_cast %c7_i32 : i32 to index
    %c0_168 = arith.constant 0 : index
    %c0_169 = arith.constant 0 : index
    %339 = vector.load %arg2[%c2_167, %338, %c0_168, %c0_169] : memref<4x8x8x32xf32, #tpu.memory_space<vmem>>, vector<1x1x8x32xf32>
    %340 = vector.shape_cast %339 : vector<1x1x8x32xf32> to vector<8x32xf32>
    %cst_170 = arith.constant dense<0.000000e+00> : vector<8x32xf32>
    %341 = tpu.matmul %323, %8, %cst_170 {dimension_numbers = #tpu.dot_dimension_numbers<[1], [0], [0], [1], [0, 0, 1, 1], [], []>} : vector<8x32xf32>, vector<32x32xf32>, vector<8x32xf32> -> vector<8x32xf32>
    %342 = arith.addf %340, %341 : vector<8x32xf32>
    %c3_171 = arith.constant 3 : index
    %343 = arith.index_cast %c7_i32 : i32 to index
    %c0_172 = arith.constant 0 : index
    %c0_173 = arith.constant 0 : index
    %344 = vector.load %arg2[%c3_171, %343, %c0_172, %c0_173] : memref<4x8x8x32xf32, #tpu.memory_space<vmem>>, vector<1x1x8x32xf32>
    %345 = vector.shape_cast %344 : vector<1x1x8x32xf32> to vector<8x32xf32>
    %cst_174 = arith.constant dense<0.000000e+00> : vector<8x32xf32>
    %346 = tpu.matmul %323, %10, %cst_174 {dimension_numbers = #tpu.dot_dimension_numbers<[1], [0], [0], [1], [0, 0, 1, 1], [], []>} : vector<8x32xf32>, vector<32x32xf32>, vector<8x32xf32> -> vector<8x32xf32>
    %347 = arith.addf %345, %346 : vector<8x32xf32>
    %348 = arith.negf %332 : vector<8x32xf32>
    %349 = math.exp %348 : vector<8x32xf32>
    %cst_175 = arith.constant 1.000000e+00 : f32
    %350 = vector.broadcast %cst_175 : f32 to vector<8x32xf32>
    %351 = arith.addf %350, %349 : vector<8x32xf32>
    %352 = arith.divf %350, %351 : vector<8x32xf32>
    %353 = arith.negf %337 : vector<8x32xf32>
    %354 = math.exp %353 : vector<8x32xf32>
    %cst_176 = arith.constant 1.000000e+00 : f32
    %355 = vector.broadcast %cst_176 : f32 to vector<8x32xf32>
    %356 = arith.addf %355, %354 : vector<8x32xf32>
    %357 = arith.divf %355, %356 : vector<8x32xf32>
    %358 = math.tanh %342 : vector<8x32xf32>
    %359 = arith.negf %347 : vector<8x32xf32>
    %360 = math.exp %359 : vector<8x32xf32>
    %cst_177 = arith.constant 1.000000e+00 : f32
    %361 = vector.broadcast %cst_177 : f32 to vector<8x32xf32>
    %362 = arith.addf %361, %360 : vector<8x32xf32>
    %363 = arith.divf %361, %362 : vector<8x32xf32>
    %364 = arith.mulf %357, %321 : vector<8x32xf32>
    %365 = arith.mulf %352, %358 : vector<8x32xf32>
    %366 = arith.addf %364, %365 : vector<8x32xf32>
    %367 = math.tanh %366 : vector<8x32xf32>
    %368 = arith.mulf %363, %367 : vector<8x32xf32>
    %c8_i32_178 = arith.constant 8 : i32
    %369 = arith.muli %c7_i32, %c8_i32_178 : i32
    %370 = tpu.assume_multiple %369, 8 : i32
    %371 = arith.index_cast %370 : i32 to index
    %c0_179 = arith.constant 0 : index
    %372 = vector.load %arg9[%371, %c0_179] : memref<64x32xf32, #tpu.memory_space<vmem>>, vector<8x32xf32>
    tpu.vector_store %arg9[%371, %c0_179], %368 {strides = array<i32>} : memref<64x32xf32, #tpu.memory_space<vmem>>, vector<8x32xf32>,
    %c8_i32_180 = arith.constant 8 : i32
    %c0_181 = arith.constant 0 : index
    %c0_182 = arith.constant 0 : index
    %373 = vector.load %arg7[%c0_181, %c0_182] : memref<8x32xf32, #tpu.memory_space<vmem>>, vector<8x32xf32>
    tpu.vector_store %arg7[%c0_181, %c0_182], %368 {strides = array<i32>} : memref<8x32xf32, #tpu.memory_space<vmem>>, vector<8x32xf32>,
    %c0_183 = arith.constant 0 : index
    %c0_184 = arith.constant 0 : index
    %374 = vector.load %arg8[%c0_183, %c0_184] : memref<8x32xf32, #tpu.memory_space<vmem>>, vector<8x32xf32>
    tpu.vector_store %arg8[%c0_183, %c0_184], %366 {strides = array<i32>} : memref<8x32xf32, #tpu.memory_space<vmem>>, vector<8x32xf32>,
    %c0_185 = arith.constant 0 : index
    %c0_186 = arith.constant 0 : index
    %375 = vector.load %arg9[%c0_185, %c0_186] : memref<64x32xf32, #tpu.memory_space<vmem>>, vector<64x32xf32>
    %cst_187 = arith.constant 0.000000e+00 : f32
    %376 = vector.broadcast %cst_187 : f32 to vector<64x32xf32>
    %377 = arith.cmpf oge, %375, %376 : vector<64x32xf32>
    %cst_188 = arith.constant 0.00999999977 : f32
    %378 = vector.broadcast %cst_188 : f32 to vector<64x32xf32>
    %379 = arith.mulf %378, %375 : vector<64x32xf32>
    %380 = arith.select %377, %375, %379 : vector<64x32xi1>, vector<64x32xf32>
    %c0_189 = arith.constant 0 : index
    %c0_190 = arith.constant 0 : index
    %381 = vector.load %arg4[%c0_189, %c0_190] : memref<32x1xf32, #tpu.memory_space<vmem>>, vector<32x1xf32>
    %cst_191 = arith.constant dense<0.000000e+00> : vector<64x1xf32>
    %382 = tpu.matmul %380, %381, %cst_191 {dimension_numbers = #tpu.dot_dimension_numbers<[1], [0], [0], [1], [0, 0, 1, 1], [], []>} : vector<64x32xf32>, vector<32x1xf32>, vector<64x1xf32> -> vector<64x1xf32>
    %c0_192 = arith.constant 0 : index
    %c0_193 = arith.constant 0 : index
    %383 = vector.load %arg5[%c0_192, %c0_193] : memref<1x1xf32, #tpu.memory_space<vmem>>, vector<1x1xf32>
    %384 = vector.broadcast %383 : vector<1x1xf32> to vector<64x1xf32>
    %385 = arith.addf %382, %384 : vector<64x1xf32>
    %386 = vector.shape_cast %385 : vector<64x1xf32> to vector<8x8x1xf32>
    %c0_194 = arith.constant 0 : index
    %c0_195 = arith.constant 0 : index
    %c0_196 = arith.constant 0 : index
    %387 = vector.load %arg6[%c0_194, %c0_195, %c0_196] : memref<8x8x1xf32, #tpu.memory_space<vmem>>, vector<8x8x1xf32>
    tpu.vector_store %arg6[%c0_194, %c0_195, %c0_196], %386 {strides = array<i32>} : memref<8x8x1xf32, #tpu.memory_space<vmem>>, vector<8x8x1xf32>,
    return
  }
  func.func @transform_0(%arg0: i32, %arg1: i32) -> (i32, i32, i32, i32) {
    %c0_i32 = arith.constant 0 : i32
    %c0_i32_0 = arith.constant 0 : i32
    %c0_i32_1 = arith.constant 0 : i32
    return %c0_i32, %arg1, %arg0, %c0_i32_0 : i32, i32, i32, i32
  }
  func.func @transform_1(%arg0: i32, %arg1: i32) -> (i32, i32, i32) {
    %c0_i32 = arith.constant 0 : i32
    %c0_i32_0 = arith.constant 0 : i32
    %c0_i32_1 = arith.constant 0 : i32
    %c0_i32_2 = arith.constant 0 : i32
    return %c0_i32, %c0_i32_0, %c0_i32_1 : i32, i32, i32
  }
  func.func @transform_2(%arg0: i32, %arg1: i32) -> (i32, i32) {
    %c0_i32 = arith.constant 0 : i32
    %c0_i32_0 = arith.constant 0 : i32
    %c0_i32_1 = arith.constant 0 : i32
    return %c0_i32, %c0_i32_0 : i32, i32
  }
  func.func @transform_3(%arg0: i32, %arg1: i32) -> (i32, i32) {
    %c0_i32 = arith.constant 0 : i32
    %c0_i32_0 = arith.constant 0 : i32
    %c0_i32_1 = arith.constant 0 : i32
    return %c0_i32, %c0_i32_0 : i32, i32
  }
  func.func @transform_4(%arg0: i32, %arg1: i32) -> (i32, i32, i32) {
    %c0_i32 = arith.constant 0 : i32
    %c0_i32_0 = arith.constant 0 : i32
    return %arg1, %arg0, %c0_i32 : i32, i32, i32
  }
}

</mosaic_0001>

<llo_original>
// kernel: lstm_audio_pallas.1
$region0: #{lstm_audio_pallas.1}
  #allocation0 [shape = 'u32[]', space=smem, size = 0x4, offset = 0x4, fixed_abs, tag = 'smem constant byte address 0x4 - core index']
  #allocation1 [shape = 'u32[72,128]{1,0:T(1,128)}', space=vmem, size = 0x9000, scoped, tag = 'internal scratch']
  #allocation2 [shape = 'f32[8,32]{1,0:T(8,128)}', space=vmem, size = 0x1000, scoped, tag = 'scratch operand']
  #allocation3 [shape = 'f32[8,32]{1,0:T(8,128)}', space=vmem, size = 0x1000, scoped, tag = 'scratch operand']
  #allocation4 [shape = 'f32[64,32]{1,0:T(8,128)}', space=vmem, size = 0x8000, scoped, tag = 'scratch operand']
  #allocation5 [shape = 'f32[1,1]{1,0:T(1,128)S(1)}', space=vmem, size = 0x200, scoped, tag = 'scoped memory for lstm_audio_pallas.1']
  %s0 = inlined_call_operand.vmem [shape: f32[4,16,8,32], index: 0, kind: input, shape index: {}]
  %s1 = inlined_call_operand.vmem [shape: f32[4,32,32], index: 1, kind: input, shape index: {}]
  %s2 = inlined_call_operand.vmem [shape: f32[32,1], index: 2, kind: input, shape index: {}]
  %s3 = inlined_call_operand.<no memory space> [shape: f32[1,1], index: 3, kind: input, shape index: {}]
  %s4 = inlined_call_operand.vmem [shape: f32[16,8,1], index: 4, kind: output, shape index: {}]
  %s5 = sld [smem:[#allocation0]]
  $region91: #{lstm_audio_pallas.1} parent=0
    _
  %s7 = ssub.s32 1, %s5
  %s8 = scalar_select 0, %s7, %s5
  %v9 = vstv %s3
  %10 = vst [vmem:[#allocation5] sm:$0x1] %v9
  $region1: #{lstm_audio_pallas.1} parent=0
    #allocation6 [shape = 'u8[262144]{0}', space=vmem, size = 0x40000, scoped, tag = 'input window, operand 0']
    loop: start=0, step=1, limit=4
    $region2: #{lstm_audio_pallas.1} parent=1 // loop_pre_header
      _
    $region3: #{lstm_audio_pallas.1} parent=1 // loop_header
      %s12 = sphi 0, %s16
      %p13 = scmp.ge.s32.totalorder %s12, 4
      %s19 = sphi 0, %s31
      %s20 = sphi 0, %s27
      %s21 = sphi 0, %s19
      %s22 = sphi 0, %s20
      %s23 = sphi 0, %s21
      %s24 = sphi 0, %s22
      %s36 = sphi 0, %s38
      %s39 = sphi 0, %s36
      %s40 = sphi 0, %s39
      %s56 = sphi 0, %s40
      %s60 = sphi 0, %s60
      %s62 = sphi 0, %s60
      %s63 = sphi 0, %s62
      %s77 = sphi 0, %s63
      %s81 = sphi 0, %s81
      %s83 = sphi 0, %s81
      %s84 = sphi 0, %s83
      %s98 = sphi 0, %s84
      %s102 = sphi 0, %s102
      %s104 = sphi 0, %s102
      %s105 = sphi 0, %s104
      %s119 = sphi 0, %s105
      %s127 = sphi 0, %s129
      %s130 = sphi 0, %s127
      %s131 = sphi 0, %s130
      %s147 = sphi 0, %s131
    $region4: #{lstm_audio_pallas.1} parent=1 // loop_header_branch
      %15 = sbr.rel (%p13) target = $region8
    $region5: #{lstm_audio_pallas.1} parent=1 // loop_body
      %s17 = ssub.s32 %s12, 1
      %s18 = ssub.s32 %s12, 2
      %s25 = sadd.s32 1, %s20
      %p26 = scmp.ge.s32.totalorder %s25, 2
      %s27 = scalar_select %p26, 0, %s25
      %s28 = sadd.s32 1, %s19
      %s29 = scalar_select %p26, %s28, %s19
      %p30 = scmp.ge.s32.totalorder %s29, 1
      %s31 = scalar_select %p30, 0, %s29
      %s32 = ssub.s32 %s20, %s27
      %s33 = ssub.s32 %s19, %s31
      %s34 = sor.u32 %s32, %s33
      %p35 = scmp.eq.s32.totalorder %s34, 0
      %s37 = sadd.s32 %s36, 1
      %s38 = scalar_select %p35, %s36, %s37
      %p41 = pneg %p35
      %p42 = scmp.eq.s32.totalorder %s12, 1
      %p43 = por %p41, %p42
      %p44 = scmp.ne.s32.totalorder %s36, %s39
      %p45 = scmp.eq.s32.totalorder %s12, 0
      %p46 = por %p44, %p45
      %p47 = scmp.ne.s32.totalorder %s36, %s39
      %p48 = scmp.eq.s32.totalorder %s17, 1
      %p49 = por %p47, %p48
      %p50 = scmp.ne.s32.totalorder %s39, %s40
      %p51 = scmp.eq.s32.totalorder %s17, 0
      %p52 = por %p50, %p51
      %p53 = scmp.ne.s32.totalorder %s39, %s40
      %p54 = scmp.eq.s32.totalorder %s18, 1
      %p55 = por %p53, %p54
      %p57 = scmp.ne.s32.totalorder %s40, %s56
      %p58 = scmp.eq.s32.totalorder %s18, 0
      %p59 = por %p57, %p58
      %s61 = sadd.s32 %s60, 1
      %p64 = scmp.eq.s32.totalorder %s12, 1
      %p65 = scmp.ne.s32.totalorder %s60, %s62
      %p66 = scmp.eq.s32.totalorder %s12, 0
      %p67 = por %p65, %p66
      %p68 = scmp.ne.s32.totalorder %s60, %s62
      %p69 = scmp.eq.s32.totalorder %s17, 1
      %p70 = por %p68, %p69
      %p71 = scmp.ne.s32.totalorder %s62, %s63
      %p72 = scmp.eq.s32.totalorder %s17, 0
      %p73 = por %p71, %p72
      %p74 = scmp.ne.s32.totalorder %s62, %s63
      %p75 = scmp.eq.s32.totalorder %s18, 1
      %p76 = por %p74, %p75
      %p78 = scmp.ne.s32.totalorder %s63, %s77
      %p79 = scmp.eq.s32.totalorder %s18, 0
      %p80 = por %p78, %p79
      %s82 = sadd.s32 %s81, 1
      %p85 = scmp.eq.s32.totalorder %s12, 1
      %p86 = scmp.ne.s32.totalorder %s81, %s83
      %p87 = scmp.eq.s32.totalorder %s12, 0
      %p88 = por %p86, %p87
      %p89 = scmp.ne.s32.totalorder %s81, %s83
      %p90 = scmp.eq.s32.totalorder %s17, 1
      %p91 = por %p89, %p90
      %p92 = scmp.ne.s32.totalorder %s83, %s84
      %p93 = scmp.eq.s32.totalorder %s17, 0
      %p94 = por %p92, %p93
      %p95 = scmp.ne.s32.totalorder %s83, %s84
      %p96 = scmp.eq.s32.totalorder %s18, 1
      %p97 = por %p95, %p96
      %p99 = scmp.ne.s32.totalorder %s84, %s98
      %p100 = scmp.eq.s32.totalorder %s18, 0
      %p101 = por %p99, %p100
      %s103 = sadd.s32 %s102, 1
      %p106 = scmp.eq.s32.totalorder %s12, 1
      %p107 = scmp.ne.s32.totalorder %s102, %s104
      %p108 = scmp.eq.s32.totalorder %s12, 0
      %p109 = por %p107, %p108
      %p110 = scmp.ne.s32.totalorder %s102, %s104
      %p111 = scmp.eq.s32.totalorder %s17, 1
      %p112 = por %p110, %p111
      %p113 = scmp.ne.s32.totalorder %s104, %s105
      %p114 = scmp.eq.s32.totalorder %s17, 0
      %p115 = por %p113, %p114
      %p116 = scmp.ne.s32.totalorder %s104, %s105
      %p117 = scmp.eq.s32.totalorder %s18, 1
      %p118 = por %p116, %p117
      %p120 = scmp.ne.s32.totalorder %s105, %s119
      %p121 = scmp.eq.s32.totalorder %s18, 0
      %p122 = por %p120, %p121
      %s123 = ssub.s32 %s20, %s27
      %s124 = ssub.s32 %s19, %s31
      %s125 = sor.u32 %s123, %s124
      %p126 = scmp.eq.s32.totalorder %s125, 0
      %s128 = sadd.s32 %s127, 1
      %s129 = scalar_select %p126, %s127, %s128
      %p132 = pneg %p126
      %p133 = scmp.eq.s32.totalorder %s12, 1
      %p134 = por %p132, %p133
      %p135 = scmp.ne.s32.totalorder %s127, %s130
      %p136 = scmp.eq.s32.totalorder %s12, 0
      %p137 = por %p135, %p136
      %p138 = scmp.ne.s32.totalorder %s127, %s130
      %p139 = scmp.eq.s32.totalorder %s17, 1
      %p140 = por %p138, %p139
      %p141 = scmp.ne.s32.totalorder %s130, %s131
      %p142 = scmp.eq.s32.totalorder %s17, 0
      %p143 = por %p141, %p142
      %p144 = scmp.ne.s32.totalorder %s130, %s131
      %p145 = scmp.eq.s32.totalorder %s18, 1
      %p146 = por %p144, %p145
      %p148 = scmp.ne.s32.totalorder %s131, %s147
      %p149 = scmp.eq.s32.totalorder %s18, 0
      %p150 = por %p148, %p149
      %p151 = scmp.le.s32.totalorder 1, %s12
      %p152 = scmp.lt.s32.totalorder %s12, 3
      %p153 = pnand %p151, %p152
      %p154 = pneg %p153
      // Predicated region
      $region9: #{lstm_audio_pallas.1} parent=5 // pred_check
        _
      $region10: #{lstm_audio_pallas.1} parent=5 // pred_check_branch
        %156 = sbr.rel (%p153) target = $region12
      $region11: #{lstm_audio_pallas.1} parent=5 // pred_region
        %s157 = ssub.s32 %s12, 1
        // Predicated region
        $region13: #{lstm_audio_pallas.1} parent=11 // pred_check
          %p158 = pneg %p73
        $region14: #{lstm_audio_pallas.1} parent=11 // pred_check_branch
          %160 = sbr.rel (%p158) target = $region16
        $region15: #{lstm_audio_pallas.1} parent=11 // pred_region
          _
        $region16: #{lstm_audio_pallas.1} parent=11 // pred_fallthru
          _
        // Predicated region
        $region17: #{lstm_audio_pallas.1} parent=11 // pred_check
          %p161 = pneg %p94
        $region18: #{lstm_audio_pallas.1} parent=11 // pred_check_branch
          %163 = sbr.rel (%p161) target = $region20
        $region19: #{lstm_audio_pallas.1} parent=11 // pred_region
          _
        $region20: #{lstm_audio_pallas.1} parent=11 // pred_fallthru
          _
        // Predicated region
        $region21: #{lstm_audio_pallas.1} parent=11 // pred_check
          %p164 = pneg %p115
        $region22: #{lstm_audio_pallas.1} parent=11 // pred_check_branch
          %166 = sbr.rel (%p164) target = $region24
        $region23: #{lstm_audio_pallas.1} parent=11 // pred_region
          _
        $region24: #{lstm_audio_pallas.1} parent=11 // pred_fallthru
          _
      $region12: #{lstm_audio_pallas.1} parent=5 // pred_fallthru
        _
      %p167 = scmp.lt.s32.totalorder %s12, 2
      // Predicated region
      $region25: #{lstm_audio_pallas.1} parent=5 // pred_check
        %p168 = pneg %p167
      $region26: #{lstm_audio_pallas.1} parent=5 // pred_check_branch
        %170 = sbr.rel (%p168) target = $region28
      $region27: #{lstm_audio_pallas.1} parent=5 // pred_region
        // Predicated region
        $region29: #{lstm_audio_pallas.1} parent=27 // pred_check
          %p171 = pneg %p46
        $region30: #{lstm_audio_pallas.1} parent=27 // pred_check_branch
          %173 = sbr.rel (%p171) target = $region32
        $region31: #{lstm_audio_pallas.1} parent=27 // pred_region
          %s174 = sand.u32 %s36, 1
          %s175 = sand.u32 %s36, 1
          %s176 = smul.addr %s175, 256
          %s177 = scalar_lea.vmem [#allocation6], %s176
          %s178 = smul.u32 8, %s20
          %s179 = sadd.s32 %s19, %s178
          %s180 = smul.addr %s179, 8
          %s181 = scalar_lea.vmem %s0, %s180
          // Predicated region
          $region33: #{lstm_audio_pallas.1} parent=31 // pred_check
            _
          $region34: #{lstm_audio_pallas.1} parent=31 // pred_check_branch
            %183 = sbr.rel (0) target = $region36
          $region35: #{lstm_audio_pallas.1} parent=31 // pred_region
            // Predicated region
            $region37: #{lstm_audio_pallas.1} parent=35 // pred_check
              _
            $region38: #{lstm_audio_pallas.1} parent=35 // pred_check_branch
              %185 = sbr.rel (0) target = $region40
            $region39: #{lstm_audio_pallas.1} parent=35 // pred_region
              // Predicated region
              $region52: #{lstm_audio_pallas.1} parent=39 // pred_check
                _
              $region53: #{lstm_audio_pallas.1} parent=39 // pred_check_branch
                %263 = sbr.rel (0) target = $region55
              $region54: #{lstm_audio_pallas.1} parent=39 // pred_region
                loop: start=0, step=1, limit=1
                $region56: #{lstm_audio_pallas.1} parent=54 // loop_pre_header
                  _
                $region57: #{lstm_audio_pallas.1} parent=54 // loop_header
                  %s265 = sphi 0, %s269
                  %p266 = scmp.ge.s32.totalorder %s265, 1
                  %s270 = sphi %s181, %s181
                  %s271 = sphi %s177, %s177
                $region58: #{lstm_audio_pallas.1} parent=54 // loop_header_branch
                  %268 = sbr.rel (%p266) target = $region62
                $region59: #{lstm_audio_pallas.1} parent=54 // loop_body
                  %v272 = vld [vmem:[%s270] sm:$0xff]
                  %273 = vst [vmem:[%s271] sm:$0xff] %v272
                  %v274 = vld [vmem:[%s270 + $0x8] sm:$0xff]
                  %275 = vst [vmem:[%s271 + $0x8] sm:$0xff] %v274
                  %v276 = vld [vmem:[%s270 + $0x10] sm:$0xff]
                  %277 = vst [vmem:[%s271 + $0x10] sm:$0xff] %v276
                  %v278 = vld [vmem:[%s270 + $0x18] sm:$0xff]
                  %279 = vst [vmem:[%s271 + $0x18] sm:$0xff] %v278
                  %v280 = vld [vmem:[%s270 + $0x20] sm:$0xff]
                  %281 = vst [vmem:[%s271 + $0x20] sm:$0xff] %v280
                  %v282 = vld [vmem:[%s270 + $0x28] sm:$0xff]
                  %283 = vst [vmem:[%s271 + $0x28] sm:$0xff] %v282
                  %v284 = vld [vmem:[%s270 + $0x30] sm:$0xff]
                  %285 = vst [vmem:[%s271 + $0x30] sm:$0xff] %v284
                  %v286 = vld [vmem:[%s270 + $0x38] sm:$0xff]
                  %287 = vst [vmem:[%s271 + $0x38] sm:$0xff] %v286
                  %v288 = vld [vmem:[%s270 + $0x80] sm:$0xff]
                  %289 = vst [vmem:[%s271 + $0x40] sm:$0xff] %v288
                  %v290 = vld [vmem:[%s270 + $0x88] sm:$0xff]
                  %291 = vst [vmem:[%s271 + $0x48] sm:$0xff] %v290
                  %v292 = vld [vmem:[%s270 + $0x90] sm:$0xff]
                  %293 = vst [vmem:[%s271 + $0x50] sm:$0xff] %v292
                  %v294 = vld [vmem:[%s270 + $0x98] sm:$0xff]
                  %295 = vst [vmem:[%s271 + $0x58] sm:$0xff] %v294
                  %v296 = vld [vmem:[%s270 + $0xa0] sm:$0xff]
                  %297 = vst [vmem:[%s271 + $0x60] sm:$0xff] %v296
                  %v298 = vld [vmem:[%s270 + $0xa8] sm:$0xff]
                  %299 = vst [vmem:[%s271 + $0x68] sm:$0xff] %v298
                  %v300 = vld [vmem:[%s270 + $0xb0] sm:$0xff]
                  %301 = vst [vmem:[%s271 + $0x70] sm:$0xff] %v300
                  %v302 = vld [vmem:[%s270 + $0xb8] sm:$0xff]
                  %303 = vst [vmem:[%s271 + $0x78] sm:$0xff] %v302
                  %v304 = vld [vmem:[%s270 + $0x100] sm:$0xff]
                  %305 = vst [vmem:[%s271 + $0x80] sm:$0xff] %v304
                  %v306 = vld [vmem:[%s270 + $0x108] sm:$0xff]
                  %307 = vst [vmem:[%s271 + $0x88] sm:$0xff] %v306
                  %v308 = vld [vmem:[%s270 + $0x110] sm:$0xff]
                  %309 = vst [vmem:[%s271 + $0x90] sm:$0xff] %v308
                  %v310 = vld [vmem:[%s270 + $0x118] sm:$0xff]
                  %311 = vst [vmem:[%s271 + $0x98] sm:$0xff] %v310
                  %v312 = vld [vmem:[%s270 + $0x120] sm:$0xff]
                  %313 = vst [vmem:[%s271 + $0xa0] sm:$0xff] %v312
                  %v314 = vld [vmem:[%s270 + $0x128] sm:$0xff]
                  %315 = vst [vmem:[%s271 + $0xa8] sm:$0xff] %v314
                  %v316 = vld [vmem:[%s270 + $0x130] sm:$0xff]
                  %317 = vst [vmem:[%s271 + $0xb0] sm:$0xff] %v316
                  %v318 = vld [vmem:[%s270 + $0x138] sm:$0xff]
                  %319 = vst [vmem:[%s271 + $0xb8] sm:$0xff] %v318
                  %v320 = vld [vmem:[%s270 + $0x180] sm:$0xff]
                  %321 = vst [vmem:[%s271 + $0xc0] sm:$0xff] %v320
                  %v322 = vld [vmem:[%s270 + $0x188] sm:$0xff]
                  %323 = vst [vmem:[%s271 + $0xc8] sm:$0xff] %v322
                  %v324 = vld [vmem:[%s270 + $0x190] sm:$0xff]
                  %325 = vst [vmem:[%s271 + $0xd0] sm:$0xff] %v324
                  %v326 = vld [vmem:[%s270 + $0x198] sm:$0xff]
                  %327 = vst [vmem:[%s271 + $0xd8] sm:$0xff] %v326
                  %v328 = vld [vmem:[%s270 + $0x1a0] sm:$0xff]
                  %329 = vst [vmem:[%s271 + $0xe0] sm:$0xff] %v328
                  %v330 = vld [vmem:[%s270 + $0x1a8] sm:$0xff]
                  %331 = vst [vmem:[%s271 + $0xe8] sm:$0xff] %v330
                  %v332 = vld [vmem:[%s270 + $0x1b0] sm:$0xff]
                  %333 = vst [vmem:[%s271 + $0xf0] sm:$0xff] %v332
                  %v334 = vld [vmem:[%s270 + $0x1b8] sm:$0xff]
                  %335 = vst [vmem:[%s271 + $0xf8] sm:$0xff] %v334
                $region60: #{lstm_audio_pallas.1} parent=54 // loop_footer
                  %s269 = sadd.s32 1, %s265
                $region61: #{lstm_audio_pallas.1} parent=54 // loop_footer_branch
                  %264 = sbr.rel target = $region57
                $region62: #{lstm_audio_pallas.1} parent=54 // loop_exit
                  _
              $region55: #{lstm_audio_pallas.1} parent=39 // pred_fallthru
                _
              // Predicated region
              $region63: #{lstm_audio_pallas.1} parent=39 // pred_check
                _
              $region64: #{lstm_audio_pallas.1} parent=39 // pred_check_branch
                %337 = sbr.rel target = $region66
              $region65: #{lstm_audio_pallas.1} parent=39 // pred_region
                _
              $region66: #{lstm_audio_pallas.1} parent=39 // pred_fallthru
                _
            $region40: #{lstm_audio_pallas.1} parent=35 // pred_fallthru
              _
            // Predicated region
            $region41: #{lstm_audio_pallas.1} parent=35 // pred_check
              _
            $region42: #{lstm_audio_pallas.1} parent=35 // pred_check_branch
              %187 = sbr.rel target = $region44
            $region43: #{lstm_audio_pallas.1} parent=35 // pred_region
              %s189 = ssub.s32 256, 1
              loop: start=0, step=1, limit=1
              $region45: #{lstm_audio_pallas.1} parent=43 // loop_pre_header
                _
              $region46: #{lstm_audio_pallas.1} parent=43 // loop_header
                %s191 = sphi 0, %s195
                %p192 = scmp.ge.s32.totalorder %s191, 1
                %s196 = sphi %s181, %s181
                %s197 = sphi %s177, %s177
              $region47: #{lstm_audio_pallas.1} parent=43 // loop_header_branch
                %194 = sbr.rel (%p192) target = $region51
              $region48: #{lstm_audio_pallas.1} parent=43 // loop_body
                %v198 = vld [vmem:[%s196] sm:%s189]
                %199 = vst [vmem:[%s197] sm:%s189] %v198
                %v200 = vld [vmem:[%s196 + $0x8] sm:%s189]
                %201 = vst [vmem:[%s197 + $0x8] sm:%s189] %v200
                %v202 = vld [vmem:[%s196 + $0x10] sm:%s189]
                %203 = vst [vmem:[%s197 + $0x10] sm:%s189] %v202
                %v204 = vld [vmem:[%s196 + $0x18] sm:%s189]
                %205 = vst [vmem:[%s197 + $0x18] sm:%s189] %v204
                %v206 = vld [vmem:[%s196 + $0x20] sm:%s189]
                %207 = vst [vmem:[%s197 + $0x20] sm:%s189] %v206
                %v208 = vld [vmem:[%s196 + $0x28] sm:%s189]
                %209 = vst [vmem:[%s197 + $0x28] sm:%s189] %v208
                %v210 = vld [vmem:[%s196 + $0x30] sm:%s189]
                %211 = vst [vmem:[%s197 + $0x30] sm:%s189] %v210
                %v212 = vld [vmem:[%s196 + $0x38] sm:%s189]
                %213 = vst [vmem:[%s197 + $0x38] sm:%s189] %v212
                %v214 = vld [vmem:[%s196 + $0x80] sm:%s189]
                %215 = vst [vmem:[%s197 + $0x40] sm:%s189] %v214
                %v216 = vld [vmem:[%s196 + $0x88] sm:%s189]
                %217 = vst [vmem:[%s197 + $0x48] sm:%s189] %v216
                %v218 = vld [vmem:[%s196 + $0x90] sm:%s189]
                %219 = vst [vmem:[%s197 + $0x50] sm:%s189] %v218
                %v220 = vld [vmem:[%s196 + $0x98] sm:%s189]
                %221 = vst [vmem:[%s197 + $0x58] sm:%s189] %v220
                %v222 = vld [vmem:[%s196 + $0xa0] sm:%s189]
                %223 = vst [vmem:[%s197 + $0x60] sm:%s189] %v222
                %v224 = vld [vmem:[%s196 + $0xa8] sm:%s189]
                %225 = vst [vmem:[%s197 + $0x68] sm:%s189] %v224
                %v226 = vld [vmem:[%s196 + $0xb0] sm:%s189]
                %227 = vst [vmem:[%s197 + $0x70] sm:%s189] %v226
                %v228 = vld [vmem:[%s196 + $0xb8] sm:%s189]
                %229 = vst [vmem:[%s197 + $0x78] sm:%s189] %v228
                %v230 = vld [vmem:[%s196 + $0x100] sm:%s189]
                %231 = vst [vmem:[%s197 + $0x80] sm:%s189] %v230
                %v232 = vld [vmem:[%s196 + $0x108] sm:%s189]
                %233 = vst [vmem:[%s197 + $0x88] sm:%s189] %v232
                %v234 = vld [vmem:[%s196 + $0x110] sm:%s189]
                %235 = vst [vmem:[%s197 + $0x90] sm:%s189] %v234
                %v236 = vld [vmem:[%s196 + $0x118] sm:%s189]
                %237 = vst [vmem:[%s197 + $0x98] sm:%s189] %v236
                %v238 = vld [vmem:[%s196 + $0x120] sm:%s189]
                %239 = vst [vmem:[%s197 + $0xa0] sm:%s189] %v238
                %v240 = vld [vmem:[%s196 + $0x128] sm:%s189]
                %241 = vst [vmem:[%s197 + $0xa8] sm:%s189] %v240
                %v242 = vld [vmem:[%s196 + $0x130] sm:%s189]
                %243 = vst [vmem:[%s197 + $0xb0] sm:%s189] %v242
                %v244 = vld [vmem:[%s196 + $0x138] sm:%s189]
                %245 = vst [vmem:[%s197 + $0xb8] sm:%s189] %v244
                %v246 = vld [vmem:[%s196 + $0x180] sm:%s189]
                %247 = vst [vmem:[%s197 + $0xc0] sm:%s189] %v246
                %v248 = vld [vmem:[%s196 + $0x188] sm:%s189]
                %249 = vst [vmem:[%s197 + $0xc8] sm:%s189] %v248
                %v250 = vld [vmem:[%s196 + $0x190] sm:%s189]
                %251 = vst [vmem:[%s197 + $0xd0] sm:%s189] %v250
                %v252 = vld [vmem:[%s196 + $0x198] sm:%s189]
                %253 = vst [vmem:[%s197 + $0xd8] sm:%s189] %v252
                %v254 = vld [vmem:[%s196 + $0x1a0] sm:%s189]
                %255 = vst [vmem:[%s197 + $0xe0] sm:%s189] %v254
                %v256 = vld [vmem:[%s196 + $0x1a8] sm:%s189]
                %257 = vst [vmem:[%s197 + $0xe8] sm:%s189] %v256
                %v258 = vld [vmem:[%s196 + $0x1b0] sm:%s189]
                %259 = vst [vmem:[%s197 + $0xf0] sm:%s189] %v258
                %v260 = vld [vmem:[%s196 + $0x1b8] sm:%s189]
                %261 = vst [vmem:[%s197 + $0xf8] sm:%s189] %v260
              $region49: #{lstm_audio_pallas.1} parent=43 // loop_footer
                %s195 = sadd.s32 1, %s191
              $region50: #{lstm_audio_pallas.1} parent=43 // loop_footer_branch
                %190 = sbr.rel target = $region46
              $region51: #{lstm_audio_pallas.1} parent=43 // loop_exit
                _
            $region44: #{lstm_audio_pallas.1} parent=35 // pred_fallthru
              _
          $region36: #{lstm_audio_pallas.1} parent=31 // pred_fallthru
            _
          %338 = vnop
        $region32: #{lstm_audio_pallas.1} parent=27 // pred_fallthru
          _
      $region28: #{lstm_audio_pallas.1} parent=5 // pred_fallthru
        _
      %p339 = scmp.le.s32.totalorder 1, %s12
      %p340 = scmp.lt.s32.totalorder %s12, 3
      %p341 = pnand %p339, %p340
      %p342 = pneg %p341
      // Predicated region
      $region67: #{lstm_audio_pallas.1} parent=5 // pred_check
        _
      $region68: #{lstm_audio_pallas.1} parent=5 // pred_check_branch
        %344 = sbr.rel (%p341) target = $region70
      $region69: #{lstm_audio_pallas.1} parent=5 // pred_region
        %s345 = ssub.s32 %s12, 1
        %s346 = sand.u32 %s39, 1
        %s347 = sand.u32 %s39, 1
        %s348 = smul.addr %s347, 256
        %s349 = scalar_lea.vmem [#allocation6], %s348
        // Predicated region
        $region71: #{lstm_audio_pallas.1} parent=69 // pred_check
          %p350 = pneg %p52
        $region72: #{lstm_audio_pallas.1} parent=69 // pred_check_branch
          %352 = sbr.rel (%p350) target = $region74
        $region73: #{lstm_audio_pallas.1} parent=69 // pred_region
          _
        $region74: #{lstm_audio_pallas.1} parent=69 // pred_fallthru
          _
        %s353 = sand.u32 %s39, 1
        %s354 = sand.u32 %s39, 1
        %s355 = smul.addr %s354, 256
        %s356 = scalar_lea.vmem [#allocation6], %s355
        %p357 = pneg %p52
        %p358 = pneg %p49
        %p359 = pneg %p73
        %p360 = pneg %p70
        %p361 = pneg %p94
        %p362 = pneg %p91
        %p363 = pneg %p115
        %p364 = pneg %p112
        %p365 = pneg %p143
        %p366 = pneg %p140
        %s367 = smul.u32 8, %s22
        %p368 = scmp.lt.s32.totalorder %s367, 15
        %s369 = scalar_select %p368, %s367, 15
        %p370 = scmp.lt.s32.totalorder %s21, 0
        %s371 = scalar_select %p370, %s21, 0
        %s372 = sadd.s32 %s371, %s369
        %s373 = smul.addr %s372, 8
        %s374 = scalar_lea.vmem %s4, %s373
        %s375 = smul.u32 8, %s22
        %s376 = smul.u32 8, %s22
        %p377 = scmp.lt.s32.totalorder %s376, 15
        %s378 = scalar_select %p377, %s376, 15
        %p379 = scmp.lt.s32.totalorder %s21, 0
        %s380 = scalar_select %p379, %s21, 0
        %s381 = sadd.s32 %s380, %s378
        %s382 = smul.addr %s381, 8
        %s383 = scalar_lea.vmem %s4, %s382
        %s384 = smul.u32 8, %s22
        %p385 = scmp.eq.s32.totalorder %s22, 0
        // Predicated region
        $region75: #{lstm_audio_pallas.1} parent=69 // pred_check
          %p386 = pneg %p385
        $region76: #{lstm_audio_pallas.1} parent=69 // pred_check_branch
          %388 = sbr.rel (%p386) target = $region78
        $region77: #{lstm_audio_pallas.1} parent=69 // pred_region
          %vm389 = vcmask 261120
          %390 = vst.msk [vmem:[#allocation2] sm:$0xff] %vm389, 0.0
          %391 = vst.msk [vmem:[#allocation3] sm:$0xff] %vm389, 0.0
        $region78: #{lstm_audio_pallas.1} parent=69 // pred_fallthru
          _
        %v392 = vld [vmem:[%s1] sm:$0xff]
        %v393 = vld [vmem:[%s1 + $0x8] sm:$0xff]
        %v394 = vld [vmem:[%s1 + $0x10] sm:$0xff]
        %v395 = vld [vmem:[%s1 + $0x18] sm:$0xff]
        %s396 = scalar_lea.vmem %s1, 32
        %v397 = vld [vmem:[%s396] sm:$0xff]
        %v398 = vld [vmem:[%s396 + $0x8] sm:$0xff]
        %v399 = vld [vmem:[%s396 + $0x10] sm:$0xff]
        %v400 = vld [vmem:[%s396 + $0x18] sm:$0xff]
        %s401 = scalar_lea.vmem %s1, 64
        %v402 = vld [vmem:[%s401] sm:$0xff]
        %v403 = vld [vmem:[%s401 + $0x8] sm:$0xff]
        %v404 = vld [vmem:[%s401 + $0x10] sm:$0xff]
        %v405 = vld [vmem:[%s401 + $0x18] sm:$0xff]
        %s406 = scalar_lea.vmem %s1, 96
        %v407 = vld [vmem:[%s406] sm:$0xff]
        %v408 = vld [vmem:[%s406 + $0x8] sm:$0xff]
        %v409 = vld [vmem:[%s406 + $0x10] sm:$0xff]
        %v410 = vld [vmem:[%s406 + $0x18] sm:$0xff]
        %v411 = vld [vmem:[#allocation2] sm:$0xff]
        %v412 = vld [vmem:[#allocation3] sm:$0xff]
        %v413 = vld [vmem:[%s349] sm:$0xff]
        %vm414 = vcmask 261120
        %v416 = vsel %vm414, %v411, 0
        %418 = vmatpush.msra.mxu0 0.0
        %419 = vmatpush.msra.mxu0 0.0
        %420 = vmatpush.msra.mxu0 0.0
        %421 = vmatpush.msra.mxu0 0.0
        %422 = vmatpush.msra.mxu0 0.0
        %423 = vmatpush.msra.mxu0 0.0
        %424 = vmatpush.msra.mxu0 0.0
        %425 = vmatpush.msra.mxu0 0.0
        %426 = vmatpush.msra.mxu0 0.0
        %427 = vmatpush.msra.mxu0 0.0
        %428 = vmatpush.msra.mxu0 0.0
        %429 = vmatpush.msra.mxu0 0.0
        %430 = vmatpush.msra.mxu0 %v395
        %431 = vmatpush.msra.mxu0 %v394
        %432 = vmatpush.msra.mxu0 %v393
        %433 = vmatpush.msra.mxu0 %v392
        %434 = vmatmul.f32.gmra.mxu0 %v416
        %v435 = vpop.f32.mrf.mxu0
        %v436 = vadd.f32 0.0, %v435
        %437 = vdwg.mxu0
        %v438 = vadd.f32 %v413, %v436
        %s439 = scalar_lea.vmem %s349, 64 [#allocation6]
        %v440 = vld [vmem:[%s439] sm:$0xff]
        %441 = vmatpush.msra.mxu0 0.0
        %442 = vmatpush.msra.mxu0 0.0
        %443 = vmatpush.msra.mxu0 0.0
        %444 = vmatpush.msra.mxu0 0.0
        %445 = vmatpush.msra.mxu0 0.0
        %446 = vmatpush.msra.mxu0 0.0
        %447 = vmatpush.msra.mxu0 0.0
        %448 = vmatpush.msra.mxu0 0.0
        %449 = vmatpush.msra.mxu0 0.0
        %450 = vmatpush.msra.mxu0 0.0
        %451 = vmatpush.msra.mxu0 0.0
        %452 = vmatpush.msra.mxu0 0.0
        %453 = vmatpush.msra.mxu0 %v400
        %454 = vmatpush.msra.mxu0 %v399
        %455 = vmatpush.msra.mxu0 %v398
        %456 = vmatpush.msra.mxu0 %v397
        %457 = vmatmul.f32.gmra.mxu0 %v416
        %v458 = vpop.f32.mrf.mxu0
        %v459 = vadd.f32 0.0, %v458
        %460 = vdwg.mxu0
        %v461 = vadd.f32 %v440, %v459
        %s462 = scalar_lea.vmem %s349, 128 [#allocation6]
        %v463 = vld [vmem:[%s462] sm:$0xff]
        %464 = vmatpush.msra.mxu0 0.0
        %465 = vmatpush.msra.mxu0 0.0
        %466 = vmatpush.msra.mxu0 0.0
        %467 = vmatpush.msra.mxu0 0.0
        %468 = vmatpush.msra.mxu0 0.0
        %469 = vmatpush.msra.mxu0 0.0
        %470 = vmatpush.msra.mxu0 0.0
        %471 = vmatpush.msra.mxu0 0.0
        %472 = vmatpush.msra.mxu0 0.0
        %473 = vmatpush.msra.mxu0 0.0
        %474 = vmatpush.msra.mxu0 0.0
        %475 = vmatpush.msra.mxu0 0.0
        %476 = vmatpush.msra.mxu0 %v405
        %477 = vmatpush.msra.mxu0 %v404
        %478 = vmatpush.msra.mxu0 %v403
        %479 = vmatpush.msra.mxu0 %v402
        %480 = vmatmul.f32.gmra.mxu0 %v416
        %v481 = vpop.f32.mrf.mxu0
        %v482 = vadd.f32 0.0, %v481
        %483 = vdwg.mxu0
        %v484 = vadd.f32 %v463, %v482
        %s485 = scalar_lea.vmem %s349, 192 [#allocation6]
        %v486 = vld [vmem:[%s485] sm:$0xff]
        %487 = vmatpush.msra.mxu0 0.0
        %488 = vmatpush.msra.mxu0 0.0
        %489 = vmatpush.msra.mxu0 0.0
        %490 = vmatpush.msra.mxu0 0.0
        %491 = vmatpush.msra.mxu0 0.0
        %492 = vmatpush.msra.mxu0 0.0
        %493 = vmatpush.msra.mxu0 0.0
        %494 = vmatpush.msra.mxu0 0.0
        %495 = vmatpush.msra.mxu0 0.0
        %496 = vmatpush.msra.mxu0 0.0
        %497 = vmatpush.msra.mxu0 0.0
        %498 = vmatpush.msra.mxu0 0.0
        %499 = vmatpush.msra.mxu0 %v410
        %500 = vmatpush.msra.mxu0 %v409
        %501 = vmatpush.msra.mxu0 %v408
        %502 = vmatpush.msra.mxu0 %v407
        %503 = vmatmul.f32.gmra.mxu0 %v416
        %v504 = vpop.f32.mrf.mxu0
        %v505 = vadd.f32 0.0, %v504
        %506 = vdwg.mxu0
        %v507 = vadd.f32 %v486, %v505
        %v508 = vxor.u32 %v438, 2147483648
        %v509 = vmul.f32 %v508, 1.442695
        %v510 = vpow.pop %v509
        %v511 = vadd.f32 %v510, 1.0
        %v512 = vrcp.pop %v511
        %v513 = vmul.f32 %v511, %v512
        %v514 = vsub.f32 1.0, %v513
        %v515 = vmul.f32 %v512, %v514
        %v516 = vadd.f32 %v512, %v515
        %vm517 = vweird.f32 %v511
        %vm518 = vweird.f32 %v512
        %vm519 = vmor %vm517, %vm518
        %v520 = vsel %vm519, %v512, %v516
        %v521 = vand.u32 2147483647, %v511
        %vm522 = vcmp.eq.f32.partialorder %v521, 8.507059e+37
        %v523 = vand.u32 %v511, 2147483648
        %v524 = vor.u32 1.1754944e-38, %v523
        %v525 = vsel %vm522, %v524, %v520
        %v526 = vmul.f32 1.0, %v525
        %v527 = vxor.u32 %v461, 2147483648
        %v528 = vmul.f32 %v527, 1.442695
        %v529 = vpow.pop %v528
        %v530 = vadd.f32 %v529, 1.0
        %v531 = vrcp.pop %v530
        %v532 = vmul.f32 %v530, %v531
        %v533 = vsub.f32 1.0, %v532
        %v534 = vmul.f32 %v531, %v533
        %v535 = vadd.f32 %v531, %v534
        %vm536 = vweird.f32 %v530
        %vm537 = vweird.f32 %v531
        %vm538 = vmor %vm536, %vm537
        %v539 = vsel %vm538, %v531, %v535
        %v540 = vand.u32 2147483647, %v530
        %vm541 = vcmp.eq.f32.partialorder %v540, 8.507059e+37
        %v542 = vand.u32 %v530, 2147483648
        %v543 = vor.u32 1.1754944e-38, %v542
        %v544 = vsel %vm541, %v543, %v539
        %v545 = vmul.f32 1.0, %v544
        %v546 = vtanh.pop %v484
        %v547 = vxor.u32 %v507, 2147483648
        %v548 = vmul.f32 %v547, 1.442695
        %v549 = vpow.pop %v548
        %v550 = vadd.f32 %v549, 1.0
        %v551 = vrcp.pop %v550
        %v552 = vmul.f32 %v550, %v551
        %v553 = vsub.f32 1.0, %v552
        %v554 = vmul.f32 %v551, %v553
        %v555 = vadd.f32 %v551, %v554
        %vm556 = vweird.f32 %v550
        %vm557 = vweird.f32 %v551
        %vm558 = vmor %vm556, %vm557
        %v559 = vsel %vm558, %v551, %v555
        %v560 = vand.u32 2147483647, %v550
        %vm561 = vcmp.eq.f32.partialorder %v560, 8.507059e+37
        %v562 = vand.u32 %v550, 2147483648
        %v563 = vor.u32 1.1754944e-38, %v562
        %v564 = vsel %vm561, %v563, %v559
        %v565 = vmul.f32 1.0, %v564
        %v566 = vmul.f32 %v545, %v412
        %v567 = vmul.f32 %v526, %v546
        %v568 = vadd.f32 %v566, %v567
        %v569 = vtanh.pop %v568
        %v570 = vmul.f32 %v565, %v569
        %571 = vst.msk [vmem:[#allocation4] sm:$0xff] %vm414, %v570
        %s572 = scalar_lea.vmem %s349, 8 [#allocation6]
        %v573 = vld [vmem:[%s572] sm:$0xff]
        %v575 = vsel %vm414, %v570, 0
        %577 = vmatpush.msra.mxu0 0.0
        %578 = vmatpush.msra.mxu0 0.0
        %579 = vmatpush.msra.mxu0 0.0
        %580 = vmatpush.msra.mxu0 0.0
        %581 = vmatpush.msra.mxu0 0.0
        %582 = vmatpush.msra.mxu0 0.0
        %583 = vmatpush.msra.mxu0 0.0
        %584 = vmatpush.msra.mxu0 0.0
        %585 = vmatpush.msra.mxu0 0.0
        %586 = vmatpush.msra.mxu0 0.0
        %587 = vmatpush.msra.mxu0 0.0
        %588 = vmatpush.msra.mxu0 0.0
        %589 = vmatpush.msra.mxu0 %v395
        %590 = vmatpush.msra.mxu0 %v394
        %591 = vmatpush.msra.mxu0 %v393
        %592 = vmatpush.msra.mxu0 %v392
        %593 = vmatmul.f32.gmra.mxu0 %v575
        %v594 = vpop.f32.mrf.mxu0
        %v595 = vadd.f32 0.0, %v594
        %596 = vdwg.mxu0
        %v597 = vadd.f32 %v573, %v595
        %s598 = scalar_lea.vmem %s349, 72 [#allocation6]
        %v599 = vld [vmem:[%s598] sm:$0xff]
        %600 = vmatpush.msra.mxu0 0.0
        %601 = vmatpush.msra.mxu0 0.0
        %602 = vmatpush.msra.mxu0 0.0
        %603 = vmatpush.msra.mxu0 0.0
        %604 = vmatpush.msra.mxu0 0.0
        %605 = vmatpush.msra.mxu0 0.0
        %606 = vmatpush.msra.mxu0 0.0
        %607 = vmatpush.msra.mxu0 0.0
        %608 = vmatpush.msra.mxu0 0.0
        %609 = vmatpush.msra.mxu0 0.0
        %610 = vmatpush.msra.mxu0 0.0
        %611 = vmatpush.msra.mxu0 0.0
        %612 = vmatpush.msra.mxu0 %v400
        %613 = vmatpush.msra.mxu0 %v399
        %614 = vmatpush.msra.mxu0 %v398
        %615 = vmatpush.msra.mxu0 %v397
        %616 = vmatmul.f32.gmra.mxu0 %v575
        %v617 = vpop.f32.mrf.mxu0
        %v618 = vadd.f32 0.0, %v617
        %619 = vdwg.mxu0
        %v620 = vadd.f32 %v599, %v618
        %s621 = scalar_lea.vmem %s349, 136 [#allocation6]
        %v622 = vld [vmem:[%s621] sm:$0xff]
        %623 = vmatpush.msra.mxu0 0.0
        %624 = vmatpush.msra.mxu0 0.0
        %625 = vmatpush.msra.mxu0 0.0
        %626 = vmatpush.msra.mxu0 0.0
        %627 = vmatpush.msra.mxu0 0.0
        %628 = vmatpush.msra.mxu0 0.0
        %629 = vmatpush.msra.mxu0 0.0
        %630 = vmatpush.msra.mxu0 0.0
        %631 = vmatpush.msra.mxu0 0.0
        %632 = vmatpush.msra.mxu0 0.0
        %633 = vmatpush.msra.mxu0 0.0
        %634 = vmatpush.msra.mxu0 0.0
        %635 = vmatpush.msra.mxu0 %v405
        %636 = vmatpush.msra.mxu0 %v404
        %637 = vmatpush.msra.mxu0 %v403
        %638 = vmatpush.msra.mxu0 %v402
        %639 = vmatmul.f32.gmra.mxu0 %v575
        %v640 = vpop.f32.mrf.mxu0
        %v641 = vadd.f32 0.0, %v640
        %642 = vdwg.mxu0
        %v643 = vadd.f32 %v622, %v641
        %s644 = scalar_lea.vmem %s349, 200 [#allocation6]
        %v645 = vld [vmem:[%s644] sm:$0xff]
        %646 = vmatpush.msra.mxu0 0.0
        %647 = vmatpush.msra.mxu0 0.0
        %648 = vmatpush.msra.mxu0 0.0
        %649 = vmatpush.msra.mxu0 0.0
        %650 = vmatpush.msra.mxu0 0.0
        %651 = vmatpush.msra.mxu0 0.0
        %652 = vmatpush.msra.mxu0 0.0
        %653 = vmatpush.msra.mxu0 0.0
        %654 = vmatpush.msra.mxu0 0.0
        %655 = vmatpush.msra.mxu0 0.0
        %656 = vmatpush.msra.mxu0 0.0
        %657 = vmatpush.msra.mxu0 0.0
        %658 = vmatpush.msra.mxu0 %v410
        %659 = vmatpush.msra.mxu0 %v409
        %660 = vmatpush.msra.mxu0 %v408
        %661 = vmatpush.msra.mxu0 %v407
        %662 = vmatmul.f32.gmra.mxu0 %v575
        %v663 = vpop.f32.mrf.mxu0
        %v664 = vadd.f32 0.0, %v663
        %665 = vdwg.mxu0
        %v666 = vadd.f32 %v645, %v664
        %v667 = vxor.u32 %v597, 2147483648
        %v668 = vmul.f32 %v667, 1.442695
        %v669 = vpow.pop %v668
        %v670 = vadd.f32 %v669, 1.0
        %v671 = vrcp.pop %v670
        %v672 = vmul.f32 %v670, %v671
        %v673 = vsub.f32 1.0, %v672
        %v674 = vmul.f32 %v671, %v673
        %v675 = vadd.f32 %v671, %v674
        %vm676 = vweird.f32 %v670
        %vm677 = vweird.f32 %v671
        %vm678 = vmor %vm676, %vm677
        %v679 = vsel %vm678, %v671, %v675
        %v680 = vand.u32 2147483647, %v670
        %vm681 = vcmp.eq.f32.partialorder %v680, 8.507059e+37
        %v682 = vand.u32 %v670, 2147483648
        %v683 = vor.u32 1.1754944e-38, %v682
        %v684 = vsel %vm681, %v683, %v679
        %v685 = vmul.f32 1.0, %v684
        %v686 = vxor.u32 %v620, 2147483648
        %v687 = vmul.f32 %v686, 1.442695
        %v688 = vpow.pop %v687
        %v689 = vadd.f32 %v688, 1.0
        %v690 = vrcp.pop %v689
        %v691 = vmul.f32 %v689, %v690
        %v692 = vsub.f32 1.0, %v691
        %v693 = vmul.f32 %v690, %v692
        %v694 = vadd.f32 %v690, %v693
        %vm695 = vweird.f32 %v689
        %vm696 = vweird.f32 %v690
        %vm697 = vmor %vm695, %vm696
        %v698 = vsel %vm697, %v690, %v694
        %v699 = vand.u32 2147483647, %v689
        %vm700 = vcmp.eq.f32.partialorder %v699, 8.507059e+37
        %v701 = vand.u32 %v689, 2147483648
        %v702 = vor.u32 1.1754944e-38, %v701
        %v703 = vsel %vm700, %v702, %v698
        %v704 = vmul.f32 1.0, %v703
        %v705 = vtanh.pop %v643
        %v706 = vxor.u32 %v666, 2147483648
        %v707 = vmul.f32 %v706, 1.442695
        %v708 = vpow.pop %v707
        %v709 = vadd.f32 %v708, 1.0
        %v710 = vrcp.pop %v709
        %v711 = vmul.f32 %v709, %v710
        %v712 = vsub.f32 1.0, %v711
        %v713 = vmul.f32 %v710, %v712
        %v714 = vadd.f32 %v710, %v713
        %vm715 = vweird.f32 %v709
        %vm716 = vweird.f32 %v710
        %vm717 = vmor %vm715, %vm716
        %v718 = vsel %vm717, %v710, %v714
        %v719 = vand.u32 2147483647, %v709
        %vm720 = vcmp.eq.f32.partialorder %v719, 8.507059e+37
        %v721 = vand.u32 %v709, 2147483648
        %v722 = vor.u32 1.1754944e-38, %v721
        %v723 = vsel %vm720, %v722, %v718
        %v724 = vmul.f32 1.0, %v723
        %v725 = vmul.f32 %v704, %v568
        %v726 = vmul.f32 %v685, %v705
        %v727 = vadd.f32 %v725, %v726
        %v728 = vtanh.pop %v727
        %v729 = vmul.f32 %v724, %v728
        %s730 = scalar_lea.vmem [#allocation4], 8
        %731 = vst.msk [vmem:[%s730] sm:$0xff] %vm414, %v729
        %s732 = scalar_lea.vmem %s349, 16 [#allocation6]
        %v733 = vld [vmem:[%s732] sm:$0xff]
        %v735 = vsel %vm414, %v729, 0
        %737 = vmatpush.msra.mxu0 0.0
        %738 = vmatpush.msra.mxu0 0.0
        %739 = vmatpush.msra.mxu0 0.0
        %740 = vmatpush.msra.mxu0 0.0
        %741 = vmatpush.msra.mxu0 0.0
        %742 = vmatpush.msra.mxu0 0.0
        %743 = vmatpush.msra.mxu0 0.0
        %744 = vmatpush.msra.mxu0 0.0
        %745 = vmatpush.msra.mxu0 0.0
        %746 = vmatpush.msra.mxu0 0.0
        %747 = vmatpush.msra.mxu0 0.0
        %748 = vmatpush.msra.mxu0 0.0
        %749 = vmatpush.msra.mxu0 %v395
        %750 = vmatpush.msra.mxu0 %v394
        %751 = vmatpush.msra.mxu0 %v393
        %752 = vmatpush.msra.mxu0 %v392
        %753 = vmatmul.f32.gmra.mxu0 %v735
        %v754 = vpop.f32.mrf.mxu0
        %v755 = vadd.f32 0.0, %v754
        %756 = vdwg.mxu0
        %v757 = vadd.f32 %v733, %v755
        %s758 = scalar_lea.vmem %s349, 80 [#allocation6]
        %v759 = vld [vmem:[%s758] sm:$0xff]
        %760 = vmatpush.msra.mxu0 0.0
        %761 = vmatpush.msra.mxu0 0.0
        %762 = vmatpush.msra.mxu0 0.0
        %763 = vmatpush.msra.mxu0 0.0
        %764 = vmatpush.msra.mxu0 0.0
        %765 = vmatpush.msra.mxu0 0.0
        %766 = vmatpush.msra.mxu0 0.0
        %767 = vmatpush.msra.mxu0 0.0
        %768 = vmatpush.msra.mxu0 0.0
        %769 = vmatpush.msra.mxu0 0.0
        %770 = vmatpush.msra.mxu0 0.0
        %771 = vmatpush.msra.mxu0 0.0
        %772 = vmatpush.msra.mxu0 %v400
        %773 = vmatpush.msra.mxu0 %v399
        %774 = vmatpush.msra.mxu0 %v398
        %775 = vmatpush.msra.mxu0 %v397
        %776 = vmatmul.f32.gmra.mxu0 %v735
        %v777 = vpop.f32.mrf.mxu0
        %v778 = vadd.f32 0.0, %v777
        %779 = vdwg.mxu0
        %v780 = vadd.f32 %v759, %v778
        %s781 = scalar_lea.vmem %s349, 144 [#allocation6]
        %v782 = vld [vmem:[%s781] sm:$0xff]
        %783 = vmatpush.msra.mxu0 0.0
        %784 = vmatpush.msra.mxu0 0.0
        %785 = vmatpush.msra.mxu0 0.0
        %786 = vmatpush.msra.mxu0 0.0
        %787 = vmatpush.msra.mxu0 0.0
        %788 = vmatpush.msra.mxu0 0.0
        %789 = vmatpush.msra.mxu0 0.0
        %790 = vmatpush.msra.mxu0 0.0
        %791 = vmatpush.msra.mxu0 0.0
        %792 = vmatpush.msra.mxu0 0.0
        %793 = vmatpush.msra.mxu0 0.0
        %794 = vmatpush.msra.mxu0 0.0
        %795 = vmatpush.msra.mxu0 %v405
        %796 = vmatpush.msra.mxu0 %v404
        %797 = vmatpush.msra.mxu0 %v403
        %798 = vmatpush.msra.mxu0 %v402
        %799 = vmatmul.f32.gmra.mxu0 %v735
        %v800 = vpop.f32.mrf.mxu0
        %v801 = vadd.f32 0.0, %v800
        %802 = vdwg.mxu0
        %v803 = vadd.f32 %v782, %v801
        %s804 = scalar_lea.vmem %s349, 208 [#allocation6]
        %v805 = vld [vmem:[%s804] sm:$0xff]
        %806 = vmatpush.msra.mxu0 0.0
        %807 = vmatpush.msra.mxu0 0.0
        %808 = vmatpush.msra.mxu0 0.0
        %809 = vmatpush.msra.mxu0 0.0
        %810 = vmatpush.msra.mxu0 0.0
        %811 = vmatpush.msra.mxu0 0.0
        %812 = vmatpush.msra.mxu0 0.0
        %813 = vmatpush.msra.mxu0 0.0
        %814 = vmatpush.msra.mxu0 0.0
        %815 = vmatpush.msra.mxu0 0.0
        %816 = vmatpush.msra.mxu0 0.0
        %817 = vmatpush.msra.mxu0 0.0
        %818 = vmatpush.msra.mxu0 %v410
        %819 = vmatpush.msra.mxu0 %v409
        %820 = vmatpush.msra.mxu0 %v408
        %821 = vmatpush.msra.mxu0 %v407
        %822 = vmatmul.f32.gmra.mxu0 %v735
        %v823 = vpop.f32.mrf.mxu0
        %v824 = vadd.f32 0.0, %v823
        %825 = vdwg.mxu0
        %v826 = vadd.f32 %v805, %v824
        %v827 = vxor.u32 %v757, 2147483648
        %v828 = vmul.f32 %v827, 1.442695
        %v829 = vpow.pop %v828
        %v830 = vadd.f32 %v829, 1.0
        %v831 = vrcp.pop %v830
        %v832 = vmul.f32 %v830, %v831
        %v833 = vsub.f32 1.0, %v832
        %v834 = vmul.f32 %v831, %v833
        %v835 = vadd.f32 %v831, %v834
        %vm836 = vweird.f32 %v830
        %vm837 = vweird.f32 %v831
        %vm838 = vmor %vm836, %vm837
        %v839 = vsel %vm838, %v831, %v835
        %v840 = vand.u32 2147483647, %v830
        %vm841 = vcmp.eq.f32.partialorder %v840, 8.507059e+37
        %v842 = vand.u32 %v830, 2147483648
        %v843 = vor.u32 1.1754944e-38, %v842
        %v844 = vsel %vm841, %v843, %v839
        %v845 = vmul.f32 1.0, %v844
        %v846 = vxor.u32 %v780, 2147483648
        %v847 = vmul.f32 %v846, 1.442695
        %v848 = vpow.pop %v847
        %v849 = vadd.f32 %v848, 1.0
        %v850 = vrcp.pop %v849
        %v851 = vmul.f32 %v849, %v850
        %v852 = vsub.f32 1.0, %v851
        %v853 = vmul.f32 %v850, %v852
        %v854 = vadd.f32 %v850, %v853
        %vm855 = vweird.f32 %v849
        %vm856 = vweird.f32 %v850
        %vm857 = vmor %vm855, %vm856
        %v858 = vsel %vm857, %v850, %v854
        %v859 = vand.u32 2147483647, %v849
        %vm860 = vcmp.eq.f32.partialorder %v859, 8.507059e+37
        %v861 = vand.u32 %v849, 2147483648
        %v862 = vor.u32 1.1754944e-38, %v861
        %v863 = vsel %vm860, %v862, %v858
        %v864 = vmul.f32 1.0, %v863
        %v865 = vtanh.pop %v803
        %v866 = vxor.u32 %v826, 2147483648
        %v867 = vmul.f32 %v866, 1.442695
        %v868 = vpow.pop %v867
        %v869 = vadd.f32 %v868, 1.0
        %v870 = vrcp.pop %v869
        %v871 = vmul.f32 %v869, %v870
        %v872 = vsub.f32 1.0, %v871
        %v873 = vmul.f32 %v870, %v872
        %v874 = vadd.f32 %v870, %v873
        %vm875 = vweird.f32 %v869
        %vm876 = vweird.f32 %v870
        %vm877 = vmor %vm875, %vm876
        %v878 = vsel %vm877, %v870, %v874
        %v879 = vand.u32 2147483647, %v869
        %vm880 = vcmp.eq.f32.partialorder %v879, 8.507059e+37
        %v881 = vand.u32 %v869, 2147483648
        %v882 = vor.u32 1.1754944e-38, %v881
        %v883 = vsel %vm880, %v882, %v878
        %v884 = vmul.f32 1.0, %v883
        %v885 = vmul.f32 %v864, %v727
        %v886 = vmul.f32 %v845, %v865
        %v887 = vadd.f32 %v885, %v886
        %v888 = vtanh.pop %v887
        %v889 = vmul.f32 %v884, %v888
        %s890 = scalar_lea.vmem [#allocation4], 16
        %891 = vst.msk [vmem:[%s890] sm:$0xff] %vm414, %v889
        %s892 = scalar_lea.vmem %s349, 24 [#allocation6]
        %v893 = vld [vmem:[%s892] sm:$0xff]
        %v895 = vsel %vm414, %v889, 0
        %897 = vmatpush.msra.mxu0 0.0
        %898 = vmatpush.msra.mxu0 0.0
        %899 = vmatpush.msra.mxu0 0.0
        %900 = vmatpush.msra.mxu0 0.0
        %901 = vmatpush.msra.mxu0 0.0
        %902 = vmatpush.msra.mxu0 0.0
        %903 = vmatpush.msra.mxu0 0.0
        %904 = vmatpush.msra.mxu0 0.0
        %905 = vmatpush.msra.mxu0 0.0
        %906 = vmatpush.msra.mxu0 0.0
        %907 = vmatpush.msra.mxu0 0.0
        %908 = vmatpush.msra.mxu0 0.0
        %909 = vmatpush.msra.mxu0 %v395
        %910 = vmatpush.msra.mxu0 %v394
        %911 = vmatpush.msra.mxu0 %v393
        %912 = vmatpush.msra.mxu0 %v392
        %913 = vmatmul.f32.gmra.mxu0 %v895
        %v914 = vpop.f32.mrf.mxu0
        %v915 = vadd.f32 0.0, %v914
        %916 = vdwg.mxu0
        %v917 = vadd.f32 %v893, %v915
        %s918 = scalar_lea.vmem %s349, 88 [#allocation6]
        %v919 = vld [vmem:[%s918] sm:$0xff]
        %920 = vmatpush.msra.mxu0 0.0
        %921 = vmatpush.msra.mxu0 0.0
        %922 = vmatpush.msra.mxu0 0.0
        %923 = vmatpush.msra.mxu0 0.0
        %924 = vmatpush.msra.mxu0 0.0
        %925 = vmatpush.msra.mxu0 0.0
        %926 = vmatpush.msra.mxu0 0.0
        %927 = vmatpush.msra.mxu0 0.0
        %928 = vmatpush.msra.mxu0 0.0
        %929 = vmatpush.msra.mxu0 0.0
        %930 = vmatpush.msra.mxu0 0.0
        %931 = vmatpush.msra.mxu0 0.0
        %932 = vmatpush.msra.mxu0 %v400
        %933 = vmatpush.msra.mxu0 %v399
        %934 = vmatpush.msra.mxu0 %v398
        %935 = vmatpush.msra.mxu0 %v397
        %936 = vmatmul.f32.gmra.mxu0 %v895
        %v937 = vpop.f32.mrf.mxu0
        %v938 = vadd.f32 0.0, %v937
        %939 = vdwg.mxu0
        %v940 = vadd.f32 %v919, %v938
        %s941 = scalar_lea.vmem %s349, 152 [#allocation6]
        %v942 = vld [vmem:[%s941] sm:$0xff]
        %943 = vmatpush.msra.mxu0 0.0
        %944 = vmatpush.msra.mxu0 0.0
        %945 = vmatpush.msra.mxu0 0.0
        %946 = vmatpush.msra.mxu0 0.0
        %947 = vmatpush.msra.mxu0 0.0
        %948 = vmatpush.msra.mxu0 0.0
        %949 = vmatpush.msra.mxu0 0.0
        %950 = vmatpush.msra.mxu0 0.0
        %951 = vmatpush.msra.mxu0 0.0
        %952 = vmatpush.msra.mxu0 0.0
        %953 = vmatpush.msra.mxu0 0.0
        %954 = vmatpush.msra.mxu0 0.0
        %955 = vmatpush.msra.mxu0 %v405
        %956 = vmatpush.msra.mxu0 %v404
        %957 = vmatpush.msra.mxu0 %v403
        %958 = vmatpush.msra.mxu0 %v402
        %959 = vmatmul.f32.gmra.mxu0 %v895
        %v960 = vpop.f32.mrf.mxu0
        %v961 = vadd.f32 0.0, %v960
        %962 = vdwg.mxu0
        %v963 = vadd.f32 %v942, %v961
        %s964 = scalar_lea.vmem %s349, 216 [#allocation6]
        %v965 = vld [vmem:[%s964] sm:$0xff]
        %966 = vmatpush.msra.mxu0 0.0
        %967 = vmatpush.msra.mxu0 0.0
        %968 = vmatpush.msra.mxu0 0.0
        %969 = vmatpush.msra.mxu0 0.0
        %970 = vmatpush.msra.mxu0 0.0
        %971 = vmatpush.msra.mxu0 0.0
        %972 = vmatpush.msra.mxu0 0.0
        %973 = vmatpush.msra.mxu0 0.0
        %974 = vmatpush.msra.mxu0 0.0
        %975 = vmatpush.msra.mxu0 0.0
        %976 = vmatpush.msra.mxu0 0.0
        %977 = vmatpush.msra.mxu0 0.0
        %978 = vmatpush.msra.mxu0 %v410
        %979 = vmatpush.msra.mxu0 %v409
        %980 = vmatpush.msra.mxu0 %v408
        %981 = vmatpush.msra.mxu0 %v407
        %982 = vmatmul.f32.gmra.mxu0 %v895
        %v983 = vpop.f32.mrf.mxu0
        %v984 = vadd.f32 0.0, %v983
        %985 = vdwg.mxu0
        %v986 = vadd.f32 %v965, %v984
        %v987 = vxor.u32 %v917, 2147483648
        %v988 = vmul.f32 %v987, 1.442695
        %v989 = vpow.pop %v988
        %v990 = vadd.f32 %v989, 1.0
        %v991 = vrcp.pop %v990
        %v992 = vmul.f32 %v990, %v991
        %v993 = vsub.f32 1.0, %v992
        %v994 = vmul.f32 %v991, %v993
        %v995 = vadd.f32 %v991, %v994
        %vm996 = vweird.f32 %v990
        %vm997 = vweird.f32 %v991
        %vm998 = vmor %vm996, %vm997
        %v999 = vsel %vm998, %v991, %v995
        %v1000 = vand.u32 2147483647, %v990
        %vm1001 = vcmp.eq.f32.partialorder %v1000, 8.507059e+37
        %v1002 = vand.u32 %v990, 2147483648
        %v1003 = vor.u32 1.1754944e-38, %v1002
        %v1004 = vsel %vm1001, %v1003, %v999
        %v1005 = vmul.f32 1.0, %v1004
        %v1006 = vxor.u32 %v940, 2147483648
        %v1007 = vmul.f32 %v1006, 1.442695
        %v1008 = vpow.pop %v1007
        %v1009 = vadd.f32 %v1008, 1.0
        %v1010 = vrcp.pop %v1009
        %v1011 = vmul.f32 %v1009, %v1010
        %v1012 = vsub.f32 1.0, %v1011
        %v1013 = vmul.f32 %v1010, %v1012
        %v1014 = vadd.f32 %v1010, %v1013
        %vm1015 = vweird.f32 %v1009
        %vm1016 = vweird.f32 %v1010
        %vm1017 = vmor %vm1015, %vm1016
        %v1018 = vsel %vm1017, %v1010, %v1014
        %v1019 = vand.u32 2147483647, %v1009
        %vm1020 = vcmp.eq.f32.partialorder %v1019, 8.507059e+37
        %v1021 = vand.u32 %v1009, 2147483648
        %v1022 = vor.u32 1.1754944e-38, %v1021
        %v1023 = vsel %vm1020, %v1022, %v1018
        %v1024 = vmul.f32 1.0, %v1023
        %v1025 = vtanh.pop %v963
        %v1026 = vxor.u32 %v986, 2147483648
        %v1027 = vmul.f32 %v1026, 1.442695
        %v1028 = vpow.pop %v1027
        %v1029 = vadd.f32 %v1028, 1.0
        %v1030 = vrcp.pop %v1029
        %v1031 = vmul.f32 %v1029, %v1030
        %v1032 = vsub.f32 1.0, %v1031
        %v1033 = vmul.f32 %v1030, %v1032
        %v1034 = vadd.f32 %v1030, %v1033
        %vm1035 = vweird.f32 %v1029
        %vm1036 = vweird.f32 %v1030
        %vm1037 = vmor %vm1035, %vm1036
        %v1038 = vsel %vm1037, %v1030, %v1034
        %v1039 = vand.u32 2147483647, %v1029
        %vm1040 = vcmp.eq.f32.partialorder %v1039, 8.507059e+37
        %v1041 = vand.u32 %v1029, 2147483648
        %v1042 = vor.u32 1.1754944e-38, %v1041
        %v1043 = vsel %vm1040, %v1042, %v1038
        %v1044 = vmul.f32 1.0, %v1043
        %v1045 = vmul.f32 %v1024, %v887
        %v1046 = vmul.f32 %v1005, %v1025
        %v1047 = vadd.f32 %v1045, %v1046
        %v1048 = vtanh.pop %v1047
        %v1049 = vmul.f32 %v1044, %v1048
        %s1050 = scalar_lea.vmem [#allocation4], 24
        %1051 = vst.msk [vmem:[%s1050] sm:$0xff] %vm414, %v1049
        %s1052 = scalar_lea.vmem %s349, 32 [#allocation6]
        %v1053 = vld [vmem:[%s1052] sm:$0xff]
        %v1055 = vsel %vm414, %v1049, 0
        %1057 = vmatpush.msra.mxu0 0.0
        %1058 = vmatpush.msra.mxu0 0.0
        %1059 = vmatpush.msra.mxu0 0.0
        %1060 = vmatpush.msra.mxu0 0.0
        %1061 = vmatpush.msra.mxu0 0.0
        %1062 = vmatpush.msra.mxu0 0.0
        %1063 = vmatpush.msra.mxu0 0.0
        %1064 = vmatpush.msra.mxu0 0.0
        %1065 = vmatpush.msra.mxu0 0.0
        %1066 = vmatpush.msra.mxu0 0.0
        %1067 = vmatpush.msra.mxu0 0.0
        %1068 = vmatpush.msra.mxu0 0.0
        %1069 = vmatpush.msra.mxu0 %v395
        %1070 = vmatpush.msra.mxu0 %v394
        %1071 = vmatpush.msra.mxu0 %v393
        %1072 = vmatpush.msra.mxu0 %v392
        %1073 = vmatmul.f32.gmra.mxu0 %v1055
        %v1074 = vpop.f32.mrf.mxu0
        %v1075 = vadd.f32 0.0, %v1074
        %1076 = vdwg.mxu0
        %v1077 = vadd.f32 %v1053, %v1075
        %s1078 = scalar_lea.vmem %s349, 96 [#allocation6]
        %v1079 = vld [vmem:[%s1078] sm:$0xff]
        %1080 = vmatpush.msra.mxu0 0.0
        %1081 = vmatpush.msra.mxu0 0.0
        %1082 = vmatpush.msra.mxu0 0.0
        %1083 = vmatpush.msra.mxu0 0.0
        %1084 = vmatpush.msra.mxu0 0.0
        %1085 = vmatpush.msra.mxu0 0.0
        %1086 = vmatpush.msra.mxu0 0.0
        %1087 = vmatpush.msra.mxu0 0.0
        %1088 = vmatpush.msra.mxu0 0.0
        %1089 = vmatpush.msra.mxu0 0.0
        %1090 = vmatpush.msra.mxu0 0.0
        %1091 = vmatpush.msra.mxu0 0.0
        %1092 = vmatpush.msra.mxu0 %v400
        %1093 = vmatpush.msra.mxu0 %v399
        %1094 = vmatpush.msra.mxu0 %v398
        %1095 = vmatpush.msra.mxu0 %v397
        %1096 = vmatmul.f32.gmra.mxu0 %v1055
        %v1097 = vpop.f32.mrf.mxu0
        %v1098 = vadd.f32 0.0, %v1097
        %1099 = vdwg.mxu0
        %v1100 = vadd.f32 %v1079, %v1098
        %s1101 = scalar_lea.vmem %s349, 160 [#allocation6]
        %v1102 = vld [vmem:[%s1101] sm:$0xff]
        %1103 = vmatpush.msra.mxu0 0.0
        %1104 = vmatpush.msra.mxu0 0.0
        %1105 = vmatpush.msra.mxu0 0.0
        %1106 = vmatpush.msra.mxu0 0.0
        %1107 = vmatpush.msra.mxu0 0.0
        %1108 = vmatpush.msra.mxu0 0.0
        %1109 = vmatpush.msra.mxu0 0.0
        %1110 = vmatpush.msra.mxu0 0.0
        %1111 = vmatpush.msra.mxu0 0.0
        %1112 = vmatpush.msra.mxu0 0.0
        %1113 = vmatpush.msra.mxu0 0.0
        %1114 = vmatpush.msra.mxu0 0.0
        %1115 = vmatpush.msra.mxu0 %v405
        %1116 = vmatpush.msra.mxu0 %v404
        %1117 = vmatpush.msra.mxu0 %v403
        %1118 = vmatpush.msra.mxu0 %v402
        %1119 = vmatmul.f32.gmra.mxu0 %v1055
        %v1120 = vpop.f32.mrf.mxu0
        %v1121 = vadd.f32 0.0, %v1120
        %1122 = vdwg.mxu0
        %v1123 = vadd.f32 %v1102, %v1121
        %s1124 = scalar_lea.vmem %s349, 224 [#allocation6]
        %v1125 = vld [vmem:[%s1124] sm:$0xff]
        %1126 = vmatpush.msra.mxu0 0.0
        %1127 = vmatpush.msra.mxu0 0.0
        %1128 = vmatpush.msra.mxu0 0.0
        %1129 = vmatpush.msra.mxu0 0.0
        %1130 = vmatpush.msra.mxu0 0.0
        %1131 = vmatpush.msra.mxu0 0.0
        %1132 = vmatpush.msra.mxu0 0.0
        %1133 = vmatpush.msra.mxu0 0.0
        %1134 = vmatpush.msra.mxu0 0.0
        %1135 = vmatpush.msra.mxu0 0.0
        %1136 = vmatpush.msra.mxu0 0.0
        %1137 = vmatpush.msra.mxu0 0.0
        %1138 = vmatpush.msra.mxu0 %v410
        %1139 = vmatpush.msra.mxu0 %v409
        %1140 = vmatpush.msra.mxu0 %v408
        %1141 = vmatpush.msra.mxu0 %v407
        %1142 = vmatmul.f32.gmra.mxu0 %v1055
        %v1143 = vpop.f32.mrf.mxu0
        %v1144 = vadd.f32 0.0, %v1143
        %1145 = vdwg.mxu0
        %v1146 = vadd.f32 %v1125, %v1144
        %v1147 = vxor.u32 %v1077, 2147483648
        %v1148 = vmul.f32 %v1147, 1.442695
        %v1149 = vpow.pop %v1148
        %v1150 = vadd.f32 %v1149, 1.0
        %v1151 = vrcp.pop %v1150
        %v1152 = vmul.f32 %v1150, %v1151
        %v1153 = vsub.f32 1.0, %v1152
        %v1154 = vmul.f32 %v1151, %v1153
        %v1155 = vadd.f32 %v1151, %v1154
        %vm1156 = vweird.f32 %v1150
        %vm1157 = vweird.f32 %v1151
        %vm1158 = vmor %vm1156, %vm1157
        %v1159 = vsel %vm1158, %v1151, %v1155
        %v1160 = vand.u32 2147483647, %v1150
        %vm1161 = vcmp.eq.f32.partialorder %v1160, 8.507059e+37
        %v1162 = vand.u32 %v1150, 2147483648
        %v1163 = vor.u32 1.1754944e-38, %v1162
        %v1164 = vsel %vm1161, %v1163, %v1159
        %v1165 = vmul.f32 1.0, %v1164
        %v1166 = vxor.u32 %v1100, 2147483648
        %v1167 = vmul.f32 %v1166, 1.442695
        %v1168 = vpow.pop %v1167
        %v1169 = vadd.f32 %v1168, 1.0
        %v1170 = vrcp.pop %v1169
        %v1171 = vmul.f32 %v1169, %v1170
        %v1172 = vsub.f32 1.0, %v1171
        %v1173 = vmul.f32 %v1170, %v1172
        %v1174 = vadd.f32 %v1170, %v1173
        %vm1175 = vweird.f32 %v1169
        %vm1176 = vweird.f32 %v1170
        %vm1177 = vmor %vm1175, %vm1176
        %v1178 = vsel %vm1177, %v1170, %v1174
        %v1179 = vand.u32 2147483647, %v1169
        %vm1180 = vcmp.eq.f32.partialorder %v1179, 8.507059e+37
        %v1181 = vand.u32 %v1169, 2147483648
        %v1182 = vor.u32 1.1754944e-38, %v1181
        %v1183 = vsel %vm1180, %v1182, %v1178
        %v1184 = vmul.f32 1.0, %v1183
        %v1185 = vtanh.pop %v1123
        %v1186 = vxor.u32 %v1146, 2147483648
        %v1187 = vmul.f32 %v1186, 1.442695
        %v1188 = vpow.pop %v1187
        %v1189 = vadd.f32 %v1188, 1.0
        %v1190 = vrcp.pop %v1189
        %v1191 = vmul.f32 %v1189, %v1190
        %v1192 = vsub.f32 1.0, %v1191
        %v1193 = vmul.f32 %v1190, %v1192
        %v1194 = vadd.f32 %v1190, %v1193
        %vm1195 = vweird.f32 %v1189
        %vm1196 = vweird.f32 %v1190
        %vm1197 = vmor %vm1195, %vm1196
        %v1198 = vsel %vm1197, %v1190, %v1194
        %v1199 = vand.u32 2147483647, %v1189
        %vm1200 = vcmp.eq.f32.partialorder %v1199, 8.507059e+37
        %v1201 = vand.u32 %v1189, 2147483648
        %v1202 = vor.u32 1.1754944e-38, %v1201
        %v1203 = vsel %vm1200, %v1202, %v1198
        %v1204 = vmul.f32 1.0, %v1203
        %v1205 = vmul.f32 %v1184, %v1047
        %v1206 = vmul.f32 %v1165, %v1185
        %v1207 = vadd.f32 %v1205, %v1206
        %v1208 = vtanh.pop %v1207
        %v1209 = vmul.f32 %v1204, %v1208
        %s1210 = scalar_lea.vmem [#allocation4], 32
        %1211 = vst.msk [vmem:[%s1210] sm:$0xff] %vm414, %v1209
        %s1212 = scalar_lea.vmem %s349, 40 [#allocation6]
        %v1213 = vld [vmem:[%s1212] sm:$0xff]
        %v1215 = vsel %vm414, %v1209, 0
        %1217 = vmatpush.msra.mxu0 0.0
        %1218 = vmatpush.msra.mxu0 0.0
        %1219 = vmatpush.msra.mxu0 0.0
        %1220 = vmatpush.msra.mxu0 0.0
        %1221 = vmatpush.msra.mxu0 0.0
        %1222 = vmatpush.msra.mxu0 0.0
        %1223 = vmatpush.msra.mxu0 0.0
        %1224 = vmatpush.msra.mxu0 0.0
        %1225 = vmatpush.msra.mxu0 0.0
        %1226 = vmatpush.msra.mxu0 0.0
        %1227 = vmatpush.msra.mxu0 0.0
        %1228 = vmatpush.msra.mxu0 0.0
        %1229 = vmatpush.msra.mxu0 %v395
        %1230 = vmatpush.msra.mxu0 %v394
        %1231 = vmatpush.msra.mxu0 %v393
        %1232 = vmatpush.msra.mxu0 %v392
        %1233 = vmatmul.f32.gmra.mxu0 %v1215
        %v1234 = vpop.f32.mrf.mxu0
        %v1235 = vadd.f32 0.0, %v1234
        %1236 = vdwg.mxu0
        %v1237 = vadd.f32 %v1213, %v1235
        %s1238 = scalar_lea.vmem %s349, 104 [#allocation6]
        %v1239 = vld [vmem:[%s1238] sm:$0xff]
        %1240 = vmatpush.msra.mxu0 0.0
        %1241 = vmatpush.msra.mxu0 0.0
        %1242 = vmatpush.msra.mxu0 0.0
        %1243 = vmatpush.msra.mxu0 0.0
        %1244 = vmatpush.msra.mxu0 0.0
        %1245 = vmatpush.msra.mxu0 0.0
        %1246 = vmatpush.msra.mxu0 0.0
        %1247 = vmatpush.msra.mxu0 0.0
        %1248 = vmatpush.msra.mxu0 0.0
        %1249 = vmatpush.msra.mxu0 0.0
        %1250 = vmatpush.msra.mxu0 0.0
        %1251 = vmatpush.msra.mxu0 0.0
        %1252 = vmatpush.msra.mxu0 %v400
        %1253 = vmatpush.msra.mxu0 %v399
        %1254 = vmatpush.msra.mxu0 %v398
        %1255 = vmatpush.msra.mxu0 %v397
        %1256 = vmatmul.f32.gmra.mxu0 %v1215
        %v1257 = vpop.f32.mrf.mxu0
        %v1258 = vadd.f32 0.0, %v1257
        %1259 = vdwg.mxu0
        %v1260 = vadd.f32 %v1239, %v1258
        %s1261 = scalar_lea.vmem %s349, 168 [#allocation6]
        %v1262 = vld [vmem:[%s1261] sm:$0xff]
        %1263 = vmatpush.msra.mxu0 0.0
        %1264 = vmatpush.msra.mxu0 0.0
        %1265 = vmatpush.msra.mxu0 0.0
        %1266 = vmatpush.msra.mxu0 0.0
        %1267 = vmatpush.msra.mxu0 0.0
        %1268 = vmatpush.msra.mxu0 0.0
        %1269 = vmatpush.msra.mxu0 0.0
        %1270 = vmatpush.msra.mxu0 0.0
        %1271 = vmatpush.msra.mxu0 0.0
        %1272 = vmatpush.msra.mxu0 0.0
        %1273 = vmatpush.msra.mxu0 0.0
        %1274 = vmatpush.msra.mxu0 0.0
        %1275 = vmatpush.msra.mxu0 %v405
        %1276 = vmatpush.msra.mxu0 %v404
        %1277 = vmatpush.msra.mxu0 %v403
        %1278 = vmatpush.msra.mxu0 %v402
        %1279 = vmatmul.f32.gmra.mxu0 %v1215
        %v1280 = vpop.f32.mrf.mxu0
        %v1281 = vadd.f32 0.0, %v1280
        %1282 = vdwg.mxu0
        %v1283 = vadd.f32 %v1262, %v1281
        %s1284 = scalar_lea.vmem %s349, 232 [#allocation6]
        %v1285 = vld [vmem:[%s1284] sm:$0xff]
        %1286 = vmatpush.msra.mxu0 0.0
        %1287 = vmatpush.msra.mxu0 0.0
        %1288 = vmatpush.msra.mxu0 0.0
        %1289 = vmatpush.msra.mxu0 0.0
        %1290 = vmatpush.msra.mxu0 0.0
        %1291 = vmatpush.msra.mxu0 0.0
        %1292 = vmatpush.msra.mxu0 0.0
        %1293 = vmatpush.msra.mxu0 0.0
        %1294 = vmatpush.msra.mxu0 0.0
        %1295 = vmatpush.msra.mxu0 0.0
        %1296 = vmatpush.msra.mxu0 0.0
        %1297 = vmatpush.msra.mxu0 0.0
        %1298 = vmatpush.msra.mxu0 %v410
        %1299 = vmatpush.msra.mxu0 %v409
        %1300 = vmatpush.msra.mxu0 %v408
        %1301 = vmatpush.msra.mxu0 %v407
        %1302 = vmatmul.f32.gmra.mxu0 %v1215
        %v1303 = vpop.f32.mrf.mxu0
        %v1304 = vadd.f32 0.0, %v1303
        %1305 = vdwg.mxu0
        %v1306 = vadd.f32 %v1285, %v1304
        %v1307 = vxor.u32 %v1237, 2147483648
        %v1308 = vmul.f32 %v1307, 1.442695
        %v1309 = vpow.pop %v1308
        %v1310 = vadd.f32 %v1309, 1.0
        %v1311 = vrcp.pop %v1310
        %v1312 = vmul.f32 %v1310, %v1311
        %v1313 = vsub.f32 1.0, %v1312
        %v1314 = vmul.f32 %v1311, %v1313
        %v1315 = vadd.f32 %v1311, %v1314
        %vm1316 = vweird.f32 %v1310
        %vm1317 = vweird.f32 %v1311
        %vm1318 = vmor %vm1316, %vm1317
        %v1319 = vsel %vm1318, %v1311, %v1315
        %v1320 = vand.u32 2147483647, %v1310
        %vm1321 = vcmp.eq.f32.partialorder %v1320, 8.507059e+37
        %v1322 = vand.u32 %v1310, 2147483648
        %v1323 = vor.u32 1.1754944e-38, %v1322
        %v1324 = vsel %vm1321, %v1323, %v1319
        %v1325 = vmul.f32 1.0, %v1324
        %v1326 = vxor.u32 %v1260, 2147483648
        %v1327 = vmul.f32 %v1326, 1.442695
        %v1328 = vpow.pop %v1327
        %v1329 = vadd.f32 %v1328, 1.0
        %v1330 = vrcp.pop %v1329
        %v1331 = vmul.f32 %v1329, %v1330
        %v1332 = vsub.f32 1.0, %v1331
        %v1333 = vmul.f32 %v1330, %v1332
        %v1334 = vadd.f32 %v1330, %v1333
        %vm1335 = vweird.f32 %v1329
        %vm1336 = vweird.f32 %v1330
        %vm1337 = vmor %vm1335, %vm1336
        %v1338 = vsel %vm1337, %v1330, %v1334
        %v1339 = vand.u32 2147483647, %v1329
        %vm1340 = vcmp.eq.f32.partialorder %v1339, 8.507059e+37
        %v1341 = vand.u32 %v1329, 2147483648
        %v1342 = vor.u32 1.1754944e-38, %v1341
        %v1343 = vsel %vm1340, %v1342, %v1338
        %v1344 = vmul.f32 1.0, %v1343
        %v1345 = vtanh.pop %v1283
        %v1346 = vxor.u32 %v1306, 2147483648
        %v1347 = vmul.f32 %v1346, 1.442695
        %v1348 = vpow.pop %v1347
        %v1349 = vadd.f32 %v1348, 1.0
        %v1350 = vrcp.pop %v1349
        %v1351 = vmul.f32 %v1349, %v1350
        %v1352 = vsub.f32 1.0, %v1351
        %v1353 = vmul.f32 %v1350, %v1352
        %v1354 = vadd.f32 %v1350, %v1353
        %vm1355 = vweird.f32 %v1349
        %vm1356 = vweird.f32 %v1350
        %vm1357 = vmor %vm1355, %vm1356
        %v1358 = vsel %vm1357, %v1350, %v1354
        %v1359 = vand.u32 2147483647, %v1349
        %vm1360 = vcmp.eq.f32.partialorder %v1359, 8.507059e+37
        %v1361 = vand.u32 %v1349, 2147483648
        %v1362 = vor.u32 1.1754944e-38, %v1361
        %v1363 = vsel %vm1360, %v1362, %v1358
        %v1364 = vmul.f32 1.0, %v1363
        %v1365 = vmul.f32 %v1344, %v1207
        %v1366 = vmul.f32 %v1325, %v1345
        %v1367 = vadd.f32 %v1365, %v1366
        %v1368 = vtanh.pop %v1367
        %v1369 = vmul.f32 %v1364, %v1368
        %s1370 = scalar_lea.vmem [#allocation4], 40
        %1371 = vst.msk [vmem:[%s1370] sm:$0xff] %vm414, %v1369
        %s1372 = scalar_lea.vmem %s349, 48 [#allocation6]
        %v1373 = vld [vmem:[%s1372] sm:$0xff]
        %v1375 = vsel %vm414, %v1369, 0
        %1377 = vmatpush.msra.mxu0 0.0
        %1378 = vmatpush.msra.mxu0 0.0
        %1379 = vmatpush.msra.mxu0 0.0
        %1380 = vmatpush.msra.mxu0 0.0
        %1381 = vmatpush.msra.mxu0 0.0
        %1382 = vmatpush.msra.mxu0 0.0
        %1383 = vmatpush.msra.mxu0 0.0
        %1384 = vmatpush.msra.mxu0 0.0
        %1385 = vmatpush.msra.mxu0 0.0
        %1386 = vmatpush.msra.mxu0 0.0
        %1387 = vmatpush.msra.mxu0 0.0
        %1388 = vmatpush.msra.mxu0 0.0
        %1389 = vmatpush.msra.mxu0 %v395
        %1390 = vmatpush.msra.mxu0 %v394
        %1391 = vmatpush.msra.mxu0 %v393
        %1392 = vmatpush.msra.mxu0 %v392
        %1393 = vmatmul.f32.gmra.mxu0 %v1375
        %v1394 = vpop.f32.mrf.mxu0
        %v1395 = vadd.f32 0.0, %v1394
        %1396 = vdwg.mxu0
        %v1397 = vadd.f32 %v1373, %v1395
        %s1398 = scalar_lea.vmem %s349, 112 [#allocation6]
        %v1399 = vld [vmem:[%s1398] sm:$0xff]
        %1400 = vmatpush.msra.mxu0 0.0
        %1401 = vmatpush.msra.mxu0 0.0
        %1402 = vmatpush.msra.mxu0 0.0
        %1403 = vmatpush.msra.mxu0 0.0
        %1404 = vmatpush.msra.mxu0 0.0
        %1405 = vmatpush.msra.mxu0 0.0
        %1406 = vmatpush.msra.mxu0 0.0
        %1407 = vmatpush.msra.mxu0 0.0
        %1408 = vmatpush.msra.mxu0 0.0
        %1409 = vmatpush.msra.mxu0 0.0
        %1410 = vmatpush.msra.mxu0 0.0
        %1411 = vmatpush.msra.mxu0 0.0
        %1412 = vmatpush.msra.mxu0 %v400
        %1413 = vmatpush.msra.mxu0 %v399
        %1414 = vmatpush.msra.mxu0 %v398
        %1415 = vmatpush.msra.mxu0 %v397
        %1416 = vmatmul.f32.gmra.mxu0 %v1375
        %v1417 = vpop.f32.mrf.mxu0
        %v1418 = vadd.f32 0.0, %v1417
        %1419 = vdwg.mxu0
        %v1420 = vadd.f32 %v1399, %v1418
        %s1421 = scalar_lea.vmem %s349, 176 [#allocation6]
        %v1422 = vld [vmem:[%s1421] sm:$0xff]
        %1423 = vmatpush.msra.mxu0 0.0
        %1424 = vmatpush.msra.mxu0 0.0
        %1425 = vmatpush.msra.mxu0 0.0
        %1426 = vmatpush.msra.mxu0 0.0
        %1427 = vmatpush.msra.mxu0 0.0
        %1428 = vmatpush.msra.mxu0 0.0
        %1429 = vmatpush.msra.mxu0 0.0
        %1430 = vmatpush.msra.mxu0 0.0
        %1431 = vmatpush.msra.mxu0 0.0
        %1432 = vmatpush.msra.mxu0 0.0
        %1433 = vmatpush.msra.mxu0 0.0
        %1434 = vmatpush.msra.mxu0 0.0
        %1435 = vmatpush.msra.mxu0 %v405
        %1436 = vmatpush.msra.mxu0 %v404
        %1437 = vmatpush.msra.mxu0 %v403
        %1438 = vmatpush.msra.mxu0 %v402
        %1439 = vmatmul.f32.gmra.mxu0 %v1375
        %v1440 = vpop.f32.mrf.mxu0
        %v1441 = vadd.f32 0.0, %v1440
        %1442 = vdwg.mxu0
        %v1443 = vadd.f32 %v1422, %v1441
        %s1444 = scalar_lea.vmem %s349, 240 [#allocation6]
        %v1445 = vld [vmem:[%s1444] sm:$0xff]
        %1446 = vmatpush.msra.mxu0 0.0
        %1447 = vmatpush.msra.mxu0 0.0
        %1448 = vmatpush.msra.mxu0 0.0
        %1449 = vmatpush.msra.mxu0 0.0
        %1450 = vmatpush.msra.mxu0 0.0
        %1451 = vmatpush.msra.mxu0 0.0
        %1452 = vmatpush.msra.mxu0 0.0
        %1453 = vmatpush.msra.mxu0 0.0
        %1454 = vmatpush.msra.mxu0 0.0
        %1455 = vmatpush.msra.mxu0 0.0
        %1456 = vmatpush.msra.mxu0 0.0
        %1457 = vmatpush.msra.mxu0 0.0
        %1458 = vmatpush.msra.mxu0 %v410
        %1459 = vmatpush.msra.mxu0 %v409
        %1460 = vmatpush.msra.mxu0 %v408
        %1461 = vmatpush.msra.mxu0 %v407
        %1462 = vmatmul.f32.gmra.mxu0 %v1375
        %v1463 = vpop.f32.mrf.mxu0
        %v1464 = vadd.f32 0.0, %v1463
        %1465 = vdwg.mxu0
        %v1466 = vadd.f32 %v1445, %v1464
        %v1467 = vxor.u32 %v1397, 2147483648
        %v1468 = vmul.f32 %v1467, 1.442695
        %v1469 = vpow.pop %v1468
        %v1470 = vadd.f32 %v1469, 1.0
        %v1471 = vrcp.pop %v1470
        %v1472 = vmul.f32 %v1470, %v1471
        %v1473 = vsub.f32 1.0, %v1472
        %v1474 = vmul.f32 %v1471, %v1473
        %v1475 = vadd.f32 %v1471, %v1474
        %vm1476 = vweird.f32 %v1470
        %vm1477 = vweird.f32 %v1471
        %vm1478 = vmor %vm1476, %vm1477
        %v1479 = vsel %vm1478, %v1471, %v1475
        %v1480 = vand.u32 2147483647, %v1470
        %vm1481 = vcmp.eq.f32.partialorder %v1480, 8.507059e+37
        %v1482 = vand.u32 %v1470, 2147483648
        %v1483 = vor.u32 1.1754944e-38, %v1482
        %v1484 = vsel %vm1481, %v1483, %v1479
        %v1485 = vmul.f32 1.0, %v1484
        %v1486 = vxor.u32 %v1420, 2147483648
        %v1487 = vmul.f32 %v1486, 1.442695
        %v1488 = vpow.pop %v1487
        %v1489 = vadd.f32 %v1488, 1.0
        %v1490 = vrcp.pop %v1489
        %v1491 = vmul.f32 %v1489, %v1490
        %v1492 = vsub.f32 1.0, %v1491
        %v1493 = vmul.f32 %v1490, %v1492
        %v1494 = vadd.f32 %v1490, %v1493
        %vm1495 = vweird.f32 %v1489
        %vm1496 = vweird.f32 %v1490
        %vm1497 = vmor %vm1495, %vm1496
        %v1498 = vsel %vm1497, %v1490, %v1494
        %v1499 = vand.u32 2147483647, %v1489
        %vm1500 = vcmp.eq.f32.partialorder %v1499, 8.507059e+37
        %v1501 = vand.u32 %v1489, 2147483648
        %v1502 = vor.u32 1.1754944e-38, %v1501
        %v1503 = vsel %vm1500, %v1502, %v1498
        %v1504 = vmul.f32 1.0, %v1503
        %v1505 = vtanh.pop %v1443
        %v1506 = vxor.u32 %v1466, 2147483648
        %v1507 = vmul.f32 %v1506, 1.442695
        %v1508 = vpow.pop %v1507
        %v1509 = vadd.f32 %v1508, 1.0
        %v1510 = vrcp.pop %v1509
        %v1511 = vmul.f32 %v1509, %v1510
        %v1512 = vsub.f32 1.0, %v1511
        %v1513 = vmul.f32 %v1510, %v1512
        %v1514 = vadd.f32 %v1510, %v1513
        %vm1515 = vweird.f32 %v1509
        %vm1516 = vweird.f32 %v1510
        %vm1517 = vmor %vm1515, %vm1516
        %v1518 = vsel %vm1517, %v1510, %v1514
        %v1519 = vand.u32 2147483647, %v1509
        %vm1520 = vcmp.eq.f32.partialorder %v1519, 8.507059e+37
        %v1521 = vand.u32 %v1509, 2147483648
        %v1522 = vor.u32 1.1754944e-38, %v1521
        %v1523 = vsel %vm1520, %v1522, %v1518
        %v1524 = vmul.f32 1.0, %v1523
        %v1525 = vmul.f32 %v1504, %v1367
        %v1526 = vmul.f32 %v1485, %v1505
        %v1527 = vadd.f32 %v1525, %v1526
        %v1528 = vtanh.pop %v1527
        %v1529 = vmul.f32 %v1524, %v1528
        %s1530 = scalar_lea.vmem [#allocation4], 48
        %1531 = vst.msk [vmem:[%s1530] sm:$0xff] %vm414, %v1529
        %s1532 = scalar_lea.vmem %s349, 56 [#allocation6]
        %v1533 = vld [vmem:[%s1532] sm:$0xff]
        %v1535 = vsel %vm414, %v1529, 0
        %1537 = vmatpush.msra.mxu0 0.0
        %1538 = vmatpush.msra.mxu0 0.0
        %1539 = vmatpush.msra.mxu0 0.0
        %1540 = vmatpush.msra.mxu0 0.0
        %1541 = vmatpush.msra.mxu0 0.0
        %1542 = vmatpush.msra.mxu0 0.0
        %1543 = vmatpush.msra.mxu0 0.0
        %1544 = vmatpush.msra.mxu0 0.0
        %1545 = vmatpush.msra.mxu0 0.0
        %1546 = vmatpush.msra.mxu0 0.0
        %1547 = vmatpush.msra.mxu0 0.0
        %1548 = vmatpush.msra.mxu0 0.0
        %1549 = vmatpush.msra.mxu0 %v395
        %1550 = vmatpush.msra.mxu0 %v394
        %1551 = vmatpush.msra.mxu0 %v393
        %1552 = vmatpush.msra.mxu0 %v392
        %1553 = vmatmul.f32.gmra.mxu0 %v1535
        %v1554 = vpop.f32.mrf.mxu0
        %v1555 = vadd.f32 0.0, %v1554
        %1556 = vdwg.mxu0
        %v1557 = vadd.f32 %v1533, %v1555
        %s1558 = scalar_lea.vmem %s349, 120 [#allocation6]
        %v1559 = vld [vmem:[%s1558] sm:$0xff]
        %1560 = vmatpush.msra.mxu0 0.0
        %1561 = vmatpush.msra.mxu0 0.0
        %1562 = vmatpush.msra.mxu0 0.0
        %1563 = vmatpush.msra.mxu0 0.0
        %1564 = vmatpush.msra.mxu0 0.0
        %1565 = vmatpush.msra.mxu0 0.0
        %1566 = vmatpush.msra.mxu0 0.0
        %1567 = vmatpush.msra.mxu0 0.0
        %1568 = vmatpush.msra.mxu0 0.0
        %1569 = vmatpush.msra.mxu0 0.0
        %1570 = vmatpush.msra.mxu0 0.0
        %1571 = vmatpush.msra.mxu0 0.0
        %1572 = vmatpush.msra.mxu0 %v400
        %1573 = vmatpush.msra.mxu0 %v399
        %1574 = vmatpush.msra.mxu0 %v398
        %1575 = vmatpush.msra.mxu0 %v397
        %1576 = vmatmul.f32.gmra.mxu0 %v1535
        %v1577 = vpop.f32.mrf.mxu0
        %v1578 = vadd.f32 0.0, %v1577
        %1579 = vdwg.mxu0
        %v1580 = vadd.f32 %v1559, %v1578
        %s1581 = scalar_lea.vmem %s349, 184 [#allocation6]
        %v1582 = vld [vmem:[%s1581] sm:$0xff]
        %1583 = vmatpush.msra.mxu0 0.0
        %1584 = vmatpush.msra.mxu0 0.0
        %1585 = vmatpush.msra.mxu0 0.0
        %1586 = vmatpush.msra.mxu0 0.0
        %1587 = vmatpush.msra.mxu0 0.0
        %1588 = vmatpush.msra.mxu0 0.0
        %1589 = vmatpush.msra.mxu0 0.0
        %1590 = vmatpush.msra.mxu0 0.0
        %1591 = vmatpush.msra.mxu0 0.0
        %1592 = vmatpush.msra.mxu0 0.0
        %1593 = vmatpush.msra.mxu0 0.0
        %1594 = vmatpush.msra.mxu0 0.0
        %1595 = vmatpush.msra.mxu0 %v405
        %1596 = vmatpush.msra.mxu0 %v404
        %1597 = vmatpush.msra.mxu0 %v403
        %1598 = vmatpush.msra.mxu0 %v402
        %1599 = vmatmul.f32.gmra.mxu0 %v1535
        %v1600 = vpop.f32.mrf.mxu0
        %v1601 = vadd.f32 0.0, %v1600
        %1602 = vdwg.mxu0
        %v1603 = vadd.f32 %v1582, %v1601
        %s1604 = scalar_lea.vmem %s349, 248 [#allocation6]
        %v1605 = vld [vmem:[%s1604] sm:$0xff]
        %1606 = vmatpush.msra.mxu0 0.0
        %1607 = vmatpush.msra.mxu0 0.0
        %1608 = vmatpush.msra.mxu0 0.0
        %1609 = vmatpush.msra.mxu0 0.0
        %1610 = vmatpush.msra.mxu0 0.0
        %1611 = vmatpush.msra.mxu0 0.0
        %1612 = vmatpush.msra.mxu0 0.0
        %1613 = vmatpush.msra.mxu0 0.0
        %1614 = vmatpush.msra.mxu0 0.0
        %1615 = vmatpush.msra.mxu0 0.0
        %1616 = vmatpush.msra.mxu0 0.0
        %1617 = vmatpush.msra.mxu0 0.0
        %1618 = vmatpush.msra.mxu0 %v410
        %1619 = vmatpush.msra.mxu0 %v409
        %1620 = vmatpush.msra.mxu0 %v408
        %1621 = vmatpush.msra.mxu0 %v407
        %1622 = vmatmul.f32.gmra.mxu0 %v1535
        %v1623 = vpop.f32.mrf.mxu0
        %v1624 = vadd.f32 0.0, %v1623
        %1625 = vdwg.mxu0
        %v1626 = vadd.f32 %v1605, %v1624
        %v1627 = vxor.u32 %v1557, 2147483648
        %v1628 = vmul.f32 %v1627, 1.442695
        %v1629 = vpow.pop %v1628
        %v1630 = vadd.f32 %v1629, 1.0
        %v1631 = vrcp.pop %v1630
        %v1632 = vmul.f32 %v1630, %v1631
        %v1633 = vsub.f32 1.0, %v1632
        %v1634 = vmul.f32 %v1631, %v1633
        %v1635 = vadd.f32 %v1631, %v1634
        %vm1636 = vweird.f32 %v1630
        %vm1637 = vweird.f32 %v1631
        %vm1638 = vmor %vm1636, %vm1637
        %v1639 = vsel %vm1638, %v1631, %v1635
        %v1640 = vand.u32 2147483647, %v1630
        %vm1641 = vcmp.eq.f32.partialorder %v1640, 8.507059e+37
        %v1642 = vand.u32 %v1630, 2147483648
        %v1643 = vor.u32 1.1754944e-38, %v1642
        %v1644 = vsel %vm1641, %v1643, %v1639
        %v1645 = vmul.f32 1.0, %v1644
        %v1646 = vxor.u32 %v1580, 2147483648
        %v1647 = vmul.f32 %v1646, 1.442695
        %v1648 = vpow.pop %v1647
        %v1649 = vadd.f32 %v1648, 1.0
        %v1650 = vrcp.pop %v1649
        %v1651 = vmul.f32 %v1649, %v1650
        %v1652 = vsub.f32 1.0, %v1651
        %v1653 = vmul.f32 %v1650, %v1652
        %v1654 = vadd.f32 %v1650, %v1653
        %vm1655 = vweird.f32 %v1649
        %vm1656 = vweird.f32 %v1650
        %vm1657 = vmor %vm1655, %vm1656
        %v1658 = vsel %vm1657, %v1650, %v1654
        %v1659 = vand.u32 2147483647, %v1649
        %vm1660 = vcmp.eq.f32.partialorder %v1659, 8.507059e+37
        %v1661 = vand.u32 %v1649, 2147483648
        %v1662 = vor.u32 1.1754944e-38, %v1661
        %v1663 = vsel %vm1660, %v1662, %v1658
        %v1664 = vmul.f32 1.0, %v1663
        %v1665 = vtanh.pop %v1603
        %v1666 = vxor.u32 %v1626, 2147483648
        %v1667 = vmul.f32 %v1666, 1.442695
        %v1668 = vpow.pop %v1667
        %v1669 = vadd.f32 %v1668, 1.0
        %v1670 = vrcp.pop %v1669
        %v1671 = vmul.f32 %v1669, %v1670
        %v1672 = vsub.f32 1.0, %v1671
        %v1673 = vmul.f32 %v1670, %v1672
        %v1674 = vadd.f32 %v1670, %v1673
        %vm1675 = vweird.f32 %v1669
        %vm1676 = vweird.f32 %v1670
        %vm1677 = vmor %vm1675, %vm1676
        %v1678 = vsel %vm1677, %v1670, %v1674
        %v1679 = vand.u32 2147483647, %v1669
        %vm1680 = vcmp.eq.f32.partialorder %v1679, 8.507059e+37
        %v1681 = vand.u32 %v1669, 2147483648
        %v1682 = vor.u32 1.1754944e-38, %v1681
        %v1683 = vsel %vm1680, %v1682, %v1678
        %v1684 = vmul.f32 1.0, %v1683
        %v1685 = vmul.f32 %v1664, %v1527
        %v1686 = vmul.f32 %v1645, %v1665
        %v1687 = vadd.f32 %v1685, %v1686
        %v1688 = vtanh.pop %v1687
        %v1689 = vmul.f32 %v1684, %v1688
        %s1690 = scalar_lea.vmem [#allocation4], 56
        %1691 = vst.msk [vmem:[%s1690] sm:$0xff] %vm414, %v1689
        %1692 = vst.msk [vmem:[#allocation2] sm:$0xff] %vm414, %v1689
        %1693 = vst.msk [vmem:[#allocation3] sm:$0xff] %vm414, %v1687
        %v1694 = vld [vmem:[#allocation4] sm:$0xff]
        %v1695 = vld [vmem:[#allocation4 + $0x8] sm:$0xff]
        %v1696 = vld [vmem:[#allocation4 + $0x10] sm:$0xff]
        %v1697 = vld [vmem:[#allocation4 + $0x18] sm:$0xff]
        %v1698 = vld [vmem:[#allocation4 + $0x20] sm:$0xff]
        %v1699 = vld [vmem:[#allocation4 + $0x28] sm:$0xff]
        %v1700 = vld [vmem:[#allocation4 + $0x30] sm:$0xff]
        %v1701 = vld [vmem:[#allocation4 + $0x38] sm:$0xff]
        %vm1702 = vcmp.ge.f32.partialorder %v1694, 0.0
        %vm1703 = vcmp.ge.f32.partialorder %v1695, 0.0
        %vm1704 = vcmp.ge.f32.partialorder %v1696, 0.0
        %vm1705 = vcmp.ge.f32.partialorder %v1697, 0.0
        %vm1706 = vcmp.ge.f32.partialorder %v1698, 0.0
        %vm1707 = vcmp.ge.f32.partialorder %v1699, 0.0
        %vm1708 = vcmp.ge.f32.partialorder %v1700, 0.0
        %vm1709 = vcmp.ge.f32.partialorder %v1701, 0.0
        %v1710 = vmul.f32 %v1694, 0.01
        %v1711 = vmul.f32 %v1695, 0.01
        %v1712 = vmul.f32 %v1696, 0.01
        %v1713 = vmul.f32 %v1697, 0.01
        %v1714 = vmul.f32 %v1698, 0.01
        %v1715 = vmul.f32 %v1699, 0.01
        %v1716 = vmul.f32 %v1700, 0.01
        %v1717 = vmul.f32 %v1701, 0.01
        %v1718 = vsel %vm1702, %v1694, %v1710
        %v1719 = vsel %vm1703, %v1695, %v1711
        %v1720 = vsel %vm1704, %v1696, %v1712
        %v1721 = vsel %vm1705, %v1697, %v1713
        %v1722 = vsel %vm1706, %v1698, %v1714
        %v1723 = vsel %vm1707, %v1699, %v1715
        %v1724 = vsel %vm1708, %v1700, %v1716
        %v1725 = vsel %vm1709, %v1701, %v1717
        %v1726 = vld [vmem:[%s2] sm:$0xff]
        %v1727 = vld [vmem:[%s2 + $0x8] sm:$0xff]
        %v1728 = vld [vmem:[%s2 + $0x10] sm:$0xff]
        %v1729 = vld [vmem:[%s2 + $0x18] sm:$0xff]
        %v1730 = vld [vmem:[#allocation5] sm:$0x1]
        %v1732 = vperm.slane %v1730, 0
        %v1735 = vsel %vm414, %v1718, 0
        %v1738 = vsel %vm414, %v1719, 0
        %v1741 = vsel %vm414, %v1720, 0
        %v1744 = vsel %vm414, %v1721, 0
        %v1747 = vsel %vm414, %v1722, 0
        %v1750 = vsel %vm414, %v1723, 0
        %v1753 = vsel %vm414, %v1724, 0
        %v1756 = vsel %vm414, %v1725, 0
        %1758 = vmatpush.msra.mxu0 0.0
        %1759 = vmatpush.msra.mxu0 0.0
        %1760 = vmatpush.msra.mxu0 0.0
        %1761 = vmatpush.msra.mxu0 0.0
        %1762 = vmatpush.msra.mxu0 0.0
        %1763 = vmatpush.msra.mxu0 0.0
        %1764 = vmatpush.msra.mxu0 0.0
        %1765 = vmatpush.msra.mxu0 0.0
        %1766 = vmatpush.msra.mxu0 0.0
        %1767 = vmatpush.msra.mxu0 0.0
        %1768 = vmatpush.msra.mxu0 0.0
        %1769 = vmatpush.msra.mxu0 0.0
        %1770 = vmatpush.msra.mxu0 %v1729
        %1771 = vmatpush.msra.mxu0 %v1728
        %1772 = vmatpush.msra.mxu0 %v1727
        %1773 = vmatpush.msra.mxu0 %v1726
        %1774 = vmatmul.f32.gmra.mxu0 %v1735
        %v1775 = vpop.f32.mrf.mxu0
        %v1776 = vadd.f32 %v1732, %v1775
        %1777 = vmatmul.f32.gmra.mxu0 %v1738
        %v1778 = vpop.f32.mrf.mxu0
        %v1779 = vadd.f32 %v1732, %v1778
        %1780 = vmatmul.f32.gmra.mxu0 %v1741
        %v1781 = vpop.f32.mrf.mxu0
        %v1782 = vadd.f32 %v1732, %v1781
        %1783 = vmatmul.f32.gmra.mxu0 %v1744
        %v1784 = vpop.f32.mrf.mxu0
        %v1785 = vadd.f32 %v1732, %v1784
        %1786 = vmatmul.f32.gmra.mxu0 %v1747
        %v1787 = vpop.f32.mrf.mxu0
        %v1788 = vadd.f32 %v1732, %v1787
        %1789 = vmatmul.f32.gmra.mxu0 %v1750
        %v1790 = vpop.f32.mrf.mxu0
        %v1791 = vadd.f32 %v1732, %v1790
        %1792 = vmatmul.f32.gmra.mxu0 %v1753
        %v1793 = vpop.f32.mrf.mxu0
        %v1794 = vadd.f32 %v1732, %v1793
        %1795 = vmatmul.f32.gmra.mxu0 %v1756
        %v1796 = vpop.f32.mrf.mxu0
        %v1797 = vadd.f32 %v1732, %v1796
        %1798 = vdwg.mxu0
        %vm1799 = vcmask 7168
        %1800 = vst.msk [vmem:[%s383] sm:$0xff] %vm1799, %v1776
        %1801 = vst.msk [vmem:[%s383 + $0x8] sm:$0xff] %vm1799, %v1779
        %1802 = vst.msk [vmem:[%s383 + $0x10] sm:$0xff] %vm1799, %v1782
        %1803 = vst.msk [vmem:[%s383 + $0x18] sm:$0xff] %vm1799, %v1785
        %1804 = vst.msk [vmem:[%s383 + $0x20] sm:$0xff] %vm1799, %v1788
        %1805 = vst.msk [vmem:[%s383 + $0x28] sm:$0xff] %vm1799, %v1791
        %1806 = vst.msk [vmem:[%s383 + $0x30] sm:$0xff] %vm1799, %v1794
        %1807 = vst.msk [vmem:[%s383 + $0x38] sm:$0xff] %vm1799, %v1797
        %s1808 = smul.u32 8, %s22
        %p1809 = scmp.lt.s32.totalorder %s1808, 15
        %s1810 = scalar_select %p1809, %s1808, 15
        %p1811 = scmp.lt.s32.totalorder %s21, 0
        %s1812 = scalar_select %p1811, %s21, 0
        %s1813 = sadd.s32 %s1812, %s1810
        %s1814 = smul.addr %s1813, 8
        %s1815 = scalar_lea.vmem %s4, %s1814
        // Predicated region
        $region79: #{lstm_audio_pallas.1} parent=69 // pred_check
          %p1816 = pneg %p140
        $region80: #{lstm_audio_pallas.1} parent=69 // pred_check_branch
          %1818 = sbr.rel (%p1816) target = $region82
        $region81: #{lstm_audio_pallas.1} parent=69 // pred_region
          %s1819 = smul.u32 8, %s22
        $region82: #{lstm_audio_pallas.1} parent=69 // pred_fallthru
          _
      $region70: #{lstm_audio_pallas.1} parent=5 // pred_fallthru
        _
      %p1820 = scmp.le.s32.totalorder 2, %s12
      // Predicated region
      $region83: #{lstm_audio_pallas.1} parent=5 // pred_check
        %p1821 = pneg %p1820
      $region84: #{lstm_audio_pallas.1} parent=5 // pred_check_branch
        %1823 = sbr.rel (%p1821) target = $region86
      $region85: #{lstm_audio_pallas.1} parent=5 // pred_region
        %s1824 = ssub.s32 %s12, 2
        // Predicated region
        $region87: #{lstm_audio_pallas.1} parent=85 // pred_check
          %p1825 = pneg %p146
        $region88: #{lstm_audio_pallas.1} parent=85 // pred_check_branch
          %1827 = sbr.rel (%p1825) target = $region90
        $region89: #{lstm_audio_pallas.1} parent=85 // pred_region
          %s1828 = smul.u32 8, %s24
          %p1829 = scmp.lt.s32.totalorder %s1828, 15
          %s1830 = scalar_select %p1829, %s1828, 15
          %p1831 = scmp.lt.s32.totalorder %s23, 0
          %s1832 = scalar_select %p1831, %s23, 0
          %s1833 = sadd.s32 %s1832, %s1830
          %s1834 = smul.addr %s1833, 8
          %s1835 = scalar_lea.vmem %s4, %s1834
        $region90: #{lstm_audio_pallas.1} parent=85 // pred_fallthru
          _
      $region86: #{lstm_audio_pallas.1} parent=5 // pred_fallthru
        _
    $region6: #{lstm_audio_pallas.1} parent=1 // loop_footer
      %s16 = sadd.s32 1, %s12
    $region7: #{lstm_audio_pallas.1} parent=1 // loop_footer_branch
      %11 = sbr.rel target = $region3
    $region8: #{lstm_audio_pallas.1} parent=1 // loop_exit
      _

</llo_original>
